<compile_context>
chip_gen: v5e
topology: v5e:2x2
jax: 0.10.0
libtpu: 0.0.40
codegen_flags: <defaults>
</compile_context>

<pallas_src>
import math
from functools import partial

import jax
import jax.numpy as jnp
from jax import lax
from jax.experimental import pallas as pl
from jax.experimental.pallas import tpu as pltpu


def _layer_norm(v, g, b, eps=1e-6):
    # v: (rows, D) f32, g/b: (1, D) f32 — Annotated-Transformer LN (unbiased std).
    mean = jnp.mean(v, axis=-1, keepdims=True)
    n = v.shape[-1]
    var = jnp.sum((v - mean) ** 2, axis=-1, keepdims=True) * (1.0 / (n - 1))
    std = jnp.sqrt(var)
    # exact divide: LN feeds every matmul, keep it accurate (review note).
    return g * ((v - mean) / (std + eps)) + b


def block_layer_kernel(x_ref,
                       ln1_g_ref, ln1_b_ref,
                       wq_ref, bq_ref, wkv_ref, bkv_ref,
                       wo_ref, bo_ref,
                       ln2_g_ref, ln2_b_ref,
                       w1_ref, b1_ref, w2_ref, b2_ref,
                       out_ref,
                       k_cache, v_cache, q_sc, ctx_sc,
                       *, h, d_per, q_tile, k_tile, ff_tile):
    bf = jnp.bfloat16
    f32 = jnp.float32
    d_attn = h * d_per
    S = x_ref.shape[1]

    s_idx = pl.program_id(1)

    ln1_g = ln1_g_ref[...].astype(f32)
    ln1_b = ln1_b_ref[...].astype(f32)

    # ---- K/V cache: LN1(full x) + fused K/V projection, once per batch elem.
    @pl.when(s_idx == 0)
    def _build_kv_cache():
        x_full = x_ref[0].astype(f32)                          # (S, D)
        x1_full = _layer_norm(x_full, ln1_g, ln1_b)
        # single lane-dense matmul: (S, D) @ (D, 2*d_attn)
        kv = jnp.dot(x1_full.astype(bf), wkv_ref[...],
                     preferred_element_type=f32) + bkv_ref[...].astype(f32)
        # head-major cache layout via lane-slice stores (data movement only).
        for i in range(h):
            k_cache[i] = kv[:, i * d_per:(i + 1) * d_per].astype(bf)
            v_cache[i] = kv[:, d_attn + i * d_per:d_attn + (i + 1) * d_per].astype(bf)

    # ---- query tile (sliced in-kernel from the resident full-sequence block).
    row0 = pl.multiple_of(s_idx * q_tile, q_tile)
    x_tile = x_ref[0, pl.ds(row0, q_tile), :].astype(f32)      # (tS, D)
    x1 = _layer_norm(x_tile, ln1_g, ln1_b)

    # fused lane-dense Q projection; 1/sqrt(d_per) already folded into wq/bq.
    q = jnp.dot(x1.astype(bf), wq_ref[...],
                preferred_element_type=f32) + bq_ref[...].astype(f32)
    for i in range(h):                                         # head-major layout
        q_sc[i] = q[:, i * d_per:(i + 1) * d_per].astype(bf)
    qh = q_sc[...]                                             # (h, tS, d_per) bf16

    # ---- online-softmax (flash) over K/V chunks of the VMEM cache.
    n_kc = S // k_tile

    def kv_step(kc, carry):
        m_p, l_p, acc_p = carry
        c0 = pl.multiple_of(kc * k_tile, k_tile)
        k_blk = k_cache[:, pl.ds(c0, k_tile), :]               # (h, tK, d_per)
        v_blk = v_cache[:, pl.ds(c0, k_tile), :]
        s_blk = jnp.einsum('hqd,hkd->hqk', qh, k_blk,
                           preferred_element_type=f32)         # (h, tS, tK)
        m_n = jnp.maximum(m_p, jnp.max(s_blk, axis=-1, keepdims=True))
        alpha = jnp.exp(m_p - m_n)
        p = jnp.exp(s_blk - m_n)
        l_n = alpha * l_p + jnp.sum(p, axis=-1, keepdims=True)
        acc_n = alpha * acc_p + jnp.einsum('hqk,hkd->hqd', p.astype(bf), v_blk,
                                           preferred_element_type=f32)
        return m_n, l_n, acc_n

    m0 = jnp.full((h, q_tile, 1), -jnp.inf, f32)
    l0 = jnp.zeros((h, q_tile, 1), f32)
    a0 = jnp.zeros((h, q_tile, d_per), f32)
    _, l_f, acc_f = lax.fori_loop(0, n_kc, kv_step, (m0, l0, a0))

    # softmax denominator: approx reciprocal on the EUP (frees the VALU).
    ctx = acc_f * pl.reciprocal(l_f, approx=True)              # (h, tS, d_per) f32

    # "concat heads" = lane-slice stores into a (tS, d_attn) scratch, then one
    # lane-dense output projection (tS, d_attn) @ (d_attn, D).
    for i in range(h):
        ctx_sc[:, i * d_per:(i + 1) * d_per] = ctx[i].astype(bf)
    attn_out = jnp.dot(ctx_sc[...], wo_ref[...],
                       preferred_element_type=f32) + bo_ref[...].astype(f32)

    x3 = x_tile + attn_out                                     # residual (dropout = id)

    # ---- sublayer 1: LN2 + position-wise FFN (d_ff-chunked) + residual.
    x4 = _layer_norm(x3, ln2_g_ref[...].astype(f32), ln2_b_ref[...].astype(f32))
    x4b = x4.astype(bf)
    d_ff = w1_ref.shape[1]
    ff = jnp.zeros_like(x3)
    for c in range(0, d_ff, ff_tile):                          # static slices -> views
        hid = jnp.maximum(
            jnp.dot(x4b, w1_ref[:, c:c + ff_tile], preferred_element_type=f32)
            + b1_ref[:, c:c + ff_tile].astype(f32), 0.0)       # (tS, ff_tile)
        ff = ff + jnp.dot(hid.astype(bf), w2_ref[c:c + ff_tile, :],
                          preferred_element_type=f32)
    ff = ff + b2_ref[...].astype(f32)

    out_ref[0] = (x3 + ff).astype(out_ref.dtype)


def _pick_tile(n, cap):
    """Largest multiple-of-8 tile <= cap that divides n (or n itself)."""
    if n <= cap:
        return n
    t = (cap // 8) * 8
    while t >= 8:
        if n % t == 0:
            return t
        t -= 8
    return n  # TODO(synk): pad ragged sequence lengths to a multiple of 8


def _vmem_capacity_bytes():
    try:
        return int(pltpu.get_tpu_info().vmem_capacity_bytes)
    except Exception:
        return 128 * 1024 * 1024


def block_layer(x, params, *, h, d_per, q_tile=None, k_tile=None, ff_tile=None):
    B, S, D = x.shape
    d_attn = h * d_per
    d_ff = params["w1"].shape[1]
    bf = jnp.bfloat16
    f32 = jnp.float32

    # ---- generation-aware tiling / VMEM limit ------------------------------
    vmem_cap = _vmem_capacity_bytes()
    small_vmem = vmem_cap <= 64 * 1024 * 1024            # e.g. v7x (64 MiB)
    if q_tile is None:
        q_tile = _pick_tile(S, 256 if small_vmem else 512)
    if k_tile is None:
        k_tile = _pick_tile(S, 512)
    if ff_tile is None:
        ff_tile = 1024
    if ff_tile > d_ff or d_ff % ff_tile != 0:
        ff_tile = d_ff  # TODO(synk): pad / mask a ragged last d_ff chunk
    assert S % q_tile == 0 and S % k_tile == 0
    vmem_limit = (44 if small_vmem else 96) * 1024 * 1024

    # ---- host-side one-time weight preprocessing ---------------------------
    scale = 1.0 / math.sqrt(d_per)
    wq_s = (params["wq"] * scale).astype(bf)                        # (D, d_attn)
    bq_s = (params["bq"] * scale).astype(f32)                       # (1, d_attn)
    wkv = jnp.concatenate([params["wk"], params["wv"]], axis=1).astype(bf)  # (D, 2*d_attn)
    bkv = jnp.concatenate([params["bk"], params["bv"]], axis=1).astype(f32) # (1, 2*d_attn)
    wo_b = params["wo"].astype(bf)                                  # (d_attn, D)
    w1_b = params["w1"].astype(bf)                                  # (D, d_ff)
    w2_b = params["w2"].astype(bf)                                  # (d_ff, D)

    # Constant-index blocks: Pallas does not re-DMA them across grid steps.
    # TODO(synk): pipeline_mode=pl.Buffered(1) to avoid double-buffered weights.
    full = lambda shape: pl.BlockSpec(shape, lambda b, s: (0,) * len(shape))
    in_specs = [
        pl.BlockSpec((1, S, D), lambda b, s: (b, 0, 0)),   # x: full sequence, query tile sliced in-kernel
        full((1, D)), full((1, D)),                        # ln1 gamma/beta
        full((D, d_attn)), full((1, d_attn)),              # wq (scaled), bq (scaled)
        full((D, 2 * d_attn)), full((1, 2 * d_attn)),      # wkv, bkv (fused K/V)
        full((d_attn, D)), full((1, D)),                   # wo, bo
        full((1, D)), full((1, D)),                        # ln2 gamma/beta
        full((D, d_ff)), full((1, d_ff)),                  # w1, b1
        full((d_ff, D)), full((1, D)),                     # w2, b2
    ]

    scratch_shapes = [
        pltpu.VMEM((h, S, d_per), bf),       # K cache (head-major, bf16)
        pltpu.VMEM((h, S, d_per), bf),       # V cache
        pltpu.VMEM((h, q_tile, d_per), bf),  # head-major Q for this tile
        pltpu.VMEM((q_tile, d_attn), bf),    # concatenated per-head context
    ]

    return pl.pallas_call(
        partial(block_layer_kernel, h=h, d_per=d_per,
                q_tile=q_tile, k_tile=k_tile, ff_tile=ff_tile),
        out_shape=jax.ShapeDtypeStruct((B, S, D), x.dtype),
        grid_spec=pltpu.PrefetchScalarGridSpec(
            num_scalar_prefetch=0,
            grid=(B, S // q_tile),
            in_specs=in_specs,
            out_specs=pl.BlockSpec((1, q_tile, D), lambda b, s: (b, s, 0)),
            scratch_shapes=scratch_shapes,
        ),
        compiler_params=pltpu.CompilerParams(
            # batch axis parallel (megacore); query-tile axis must stay in
            # order so the K/V cache built at s == 0 is reused at s > 0.
            dimension_semantics=("parallel", "arbitrary"),
            vmem_limit_bytes=vmem_limit,
        ),
    )(x,
      params["ln1_g"], params["ln1_b"],
      wq_s, bq_s, wkv, bkv,
      wo_b, params["bo"],
      params["ln2_g"], params["ln2_b"],
      w1_b, params["b1"], w2_b, params["b2"])


def block_layer_ref(x, p, *, h, d_per):
    """Pure-JAX f32 reference for correctness check."""
    x = x.astype(jnp.float32)

    def ln(v, g, b, eps=1e-6):
        mean = jnp.mean(v, -1, keepdims=True)
        n = v.shape[-1]
        std = jnp.sqrt(jnp.sum((v - mean) ** 2, -1, keepdims=True) / (n - 1))
        return g[0] * (v - mean) / (std + eps) + b[0]

    x1 = ln(x, p["ln1_g"], p["ln1_b"])
    q = x1 @ p["wq"] + p["bq"][0]
    k = x1 @ p["wk"] + p["bk"][0]
    v = x1 @ p["wv"] + p["bv"][0]
    B, S, _ = x.shape
    rs = lambda t: t.reshape(B, S, h, d_per).transpose(0, 2, 1, 3)
    qh, kh, vh = rs(q), rs(k), rs(v)
    sc = jnp.einsum("bhqd,bhkd->bhqk", qh, kh) / math.sqrt(d_per)
    pr = jax.nn.softmax(sc, axis=-1)
    oh = jnp.einsum("bhqk,bhkd->bhqd", pr, vh).transpose(0, 2, 1, 3).reshape(B, S, -1)
    x3 = x + (oh @ p["wo"] + p["bo"][0])
    x4 = ln(x3, p["ln2_g"], p["ln2_b"])
    ff = jnp.maximum(x4 @ p["w1"] + p["b1"][0], 0.0) @ p["w2"] + p["b2"][0]
    return x3 + ff


if __name__ == "__main__":
    # small shapes consistent with the module
    B, S = 2, 16
    h, d_per = 4, 8
    d_model = 32
    d_ff = 64
    d_attn = h * d_per

    key = jax.random.PRNGKey(0)
    ks = jax.random.split(key, 13)
    init = lambda k, shp: (0.02 * jax.random.normal(k, shp)).astype(jnp.float32)

    params = {
        "ln1_g": jnp.ones((1, d_model), jnp.float32),
        "ln1_b": jnp.zeros((1, d_model), jnp.float32),
        "wq": init(ks[0], (d_model, d_attn)), "bq": init(ks[1], (1, d_attn)),
        "wk": init(ks[2], (d_model, d_attn)), "bk": init(ks[3], (1, d_attn)),
        "wv": init(ks[4], (d_model, d_attn)), "bv": init(ks[5], (1, d_attn)),
        "wo": init(ks[6], (d_attn, d_model)), "bo": init(ks[7], (1, d_model)),
        "ln2_g": jnp.ones((1, d_model), jnp.float32),
        "ln2_b": jnp.zeros((1, d_model), jnp.float32),
        "w1": init(ks[8], (d_model, d_ff)), "b1": init(ks[9], (1, d_ff)),
        "w2": init(ks[10], (d_ff, d_model)), "b2": init(ks[11], (1, d_model)),
    }

    x = jax.random.normal(ks[12], (B, S, d_model), jnp.float32)

    # q_tile / k_tile chosen to exercise the multi-tile query path (K/V cache
    # reuse across s) and the multi-chunk flash loop even at these tiny sizes.
    out = block_layer(x, params, h=h, d_per=d_per, q_tile=8, k_tile=8)
    out = jax.block_until_ready(out)

    ref = block_layer_ref(x, params, h=h, d_per=d_per)
    assert out.shape == (B, S, d_model)
    max_err = float(jnp.max(jnp.abs(out - ref)))
    # bf16 matmul operands + approx softmax reciprocal -> slightly loose tol
    assert jnp.allclose(out, ref, atol=2e-2, rtol=2e-2), \
        f"mismatch vs reference (max abs err {max_err})"

    print("KERNEL_OK")
</pallas_src>

<mosaic_0001>
module attributes {stable_mosaic.version = 11 : i64} {
  func.func @block_layer_kernel(%arg0: i32, %arg1: i32, %arg2: memref<1x16x32xf32, #tpu.memory_space<vmem>>, %arg3: memref<1x32xf32, #tpu.memory_space<vmem>>, %arg4: memref<1x32xf32, #tpu.memory_space<vmem>>, %arg5: memref<32x32xbf16, #tpu.memory_space<vmem>>, %arg6: memref<1x32xf32, #tpu.memory_space<vmem>>, %arg7: memref<32x64xbf16, #tpu.memory_space<vmem>>, %arg8: memref<1x64xf32, #tpu.memory_space<vmem>>, %arg9: memref<32x32xbf16, #tpu.memory_space<vmem>>, %arg10: memref<1x32xf32, #tpu.memory_space<vmem>>, %arg11: memref<1x32xf32, #tpu.memory_space<vmem>>, %arg12: memref<1x32xf32, #tpu.memory_space<vmem>>, %arg13: memref<32x64xbf16, #tpu.memory_space<vmem>>, %arg14: memref<1x64xf32, #tpu.memory_space<vmem>>, %arg15: memref<64x32xbf16, #tpu.memory_space<vmem>>, %arg16: memref<1x32xf32, #tpu.memory_space<vmem>>, %arg17: memref<1x8x32xf32, #tpu.memory_space<vmem>>, %arg18: memref<4x16x8xbf16, #tpu.memory_space<vmem>>, %arg19: memref<4x16x8xbf16, #tpu.memory_space<vmem>>, %arg20: memref<4x8x8xbf16, #tpu.memory_space<vmem>>, %arg21: memref<8x32xbf16, #tpu.memory_space<vmem>>) attributes {dimension_semantics = [#tpu.dimension_semantics<parallel>, #tpu.dimension_semantics<arbitrary>], iteration_bounds = array<i64: 2, 2>, scalar_prefetch = 0 : i64, scratch_operands = 4 : i64, tpu.core_type = #tpu.core_type<tc>, window_params = [{transform_indices = @transform_0, window_bounds = array<i64: 1, 16, 32>}, {pipeline_mode = #tpu.pipeline_mode<synchronous>, transform_indices = @transform_1, window_bounds = array<i64: 1, 32>}, {pipeline_mode = #tpu.pipeline_mode<synchronous>, transform_indices = @transform_2, window_bounds = array<i64: 1, 32>}, {pipeline_mode = #tpu.pipeline_mode<synchronous>, transform_indices = @transform_3, window_bounds = array<i64: 32, 32>}, {pipeline_mode = #tpu.pipeline_mode<synchronous>, transform_indices = @transform_4, window_bounds = array<i64: 1, 32>}, {pipeline_mode = #tpu.pipeline_mode<synchronous>, transform_indices = @transform_5, window_bounds = array<i64: 32, 64>}, {pipeline_mode = #tpu.pipeline_mode<synchronous>, transform_indices = @transform_6, window_bounds = array<i64: 1, 64>}, {pipeline_mode = #tpu.pipeline_mode<synchronous>, transform_indices = @transform_7, window_bounds = array<i64: 32, 32>}, {pipeline_mode = #tpu.pipeline_mode<synchronous>, transform_indices = @transform_8, window_bounds = array<i64: 1, 32>}, {pipeline_mode = #tpu.pipeline_mode<synchronous>, transform_indices = @transform_9, window_bounds = array<i64: 1, 32>}, {pipeline_mode = #tpu.pipeline_mode<synchronous>, transform_indices = @transform_10, window_bounds = array<i64: 1, 32>}, {pipeline_mode = #tpu.pipeline_mode<synchronous>, transform_indices = @transform_11, window_bounds = array<i64: 32, 64>}, {pipeline_mode = #tpu.pipeline_mode<synchronous>, transform_indices = @transform_12, window_bounds = array<i64: 1, 64>}, {pipeline_mode = #tpu.pipeline_mode<synchronous>, transform_indices = @transform_13, window_bounds = array<i64: 64, 32>}, {pipeline_mode = #tpu.pipeline_mode<synchronous>, transform_indices = @transform_14, window_bounds = array<i64: 1, 32>}, {transform_indices = @transform_15, window_bounds = array<i64: 1, 8, 32>}]} {
    %c0 = arith.constant 0 : index
    %c0_0 = arith.constant 0 : index
    %0 = vector.load %arg3[%c0, %c0_0] : memref<1x32xf32, #tpu.memory_space<vmem>>, vector<1x32xf32>
    %c0_1 = arith.constant 0 : index
    %c0_2 = arith.constant 0 : index
    %1 = vector.load %arg4[%c0_1, %c0_2] : memref<1x32xf32, #tpu.memory_space<vmem>>, vector<1x32xf32>
    %c0_i32 = arith.constant 0 : i32
    %2 = arith.cmpi eq, %arg1, %c0_i32 : i32
    %3 = arith.extui %2 : i1 to i32
    %c0_i32_3 = arith.constant 0 : i32
    %4 = arith.cmpi ne, %3, %c0_i32_3 : i32
    scf.if %4 {
      %c0_68 = arith.constant 0 : index
      %c0_69 = arith.constant 0 : index
      %c0_70 = arith.constant 0 : index
      %134 = vector.load %arg2[%c0_68, %c0_69, %c0_70] : memref<1x16x32xf32, #tpu.memory_space<vmem>>, vector<1x16x32xf32>
      %135 = vector.shape_cast %134 : vector<1x16x32xf32> to vector<16x32xf32>
      %cst_71 = arith.constant dense<0.000000e+00> : vector<16xf32>
      %136 = vector.multi_reduction <add>, %135, %cst_71 [1] : vector<16x32xf32> to vector<16xf32>
      %137 = vector.shape_cast %136 : vector<16xf32> to vector<16x1xf32>
      %cst_72 = arith.constant 3.200000e+01 : f32
      %138 = vector.broadcast %cst_72 : f32 to vector<16x1xf32>
      %139 = arith.divf %137, %138 : vector<16x1xf32>
      %140 = vector.broadcast %139 : vector<16x1xf32> to vector<16x32xf32>
      %141 = arith.subf %135, %140 : vector<16x32xf32>
      %142 = arith.mulf %141, %141 : vector<16x32xf32>
      %cst_73 = arith.constant dense<0.000000e+00> : vector<16xf32>
      %143 = vector.multi_reduction <add>, %142, %cst_73 [1] : vector<16x32xf32> to vector<16xf32>
      %144 = vector.shape_cast %143 : vector<16xf32> to vector<16x1xf32>
      %cst_74 = arith.constant 0.0322580636 : f32
      %145 = vector.broadcast %cst_74 : f32 to vector<16x1xf32>
      %146 = arith.mulf %144, %145 : vector<16x1xf32>
      %147 = math.sqrt %146 : vector<16x1xf32>
      %148 = vector.broadcast %139 : vector<16x1xf32> to vector<16x32xf32>
      %149 = arith.subf %135, %148 : vector<16x32xf32>
      %cst_75 = arith.constant 9.99999997E-7 : f32
      %150 = vector.broadcast %cst_75 : f32 to vector<16x1xf32>
      %151 = arith.addf %147, %150 : vector<16x1xf32>
      %152 = vector.broadcast %151 : vector<16x1xf32> to vector<16x32xf32>
      %153 = arith.divf %149, %152 : vector<16x32xf32>
      %154 = vector.broadcast %0 : vector<1x32xf32> to vector<16x32xf32>
      %155 = arith.mulf %154, %153 : vector<16x32xf32>
      %156 = vector.broadcast %1 : vector<1x32xf32> to vector<16x32xf32>
      %157 = arith.addf %155, %156 : vector<16x32xf32>
      %158 = arith.truncf %157 : vector<16x32xf32> to vector<16x32xbf16>
      %c0_76 = arith.constant 0 : index
      %c0_77 = arith.constant 0 : index
      %159 = vector.load %arg7[%c0_76, %c0_77] : memref<32x64xbf16, #tpu.memory_space<vmem>>, vector<32x64xbf16>
      %cst_78 = arith.constant dense<0.000000e+00> : vector<16x64xf32>
      %160 = tpu.matmul %158, %159, %cst_78 {dimension_numbers = #tpu.dot_dimension_numbers<[1], [0], [0], [1], [0, 0, 1, 1], [], []>} : vector<16x32xbf16>, vector<32x64xbf16>, vector<16x64xf32> -> vector<16x64xf32>
      %c0_79 = arith.constant 0 : index
      %c0_80 = arith.constant 0 : index
      %161 = vector.load %arg8[%c0_79, %c0_80] : memref<1x64xf32, #tpu.memory_space<vmem>>, vector<1x64xf32>
      %162 = vector.broadcast %161 : vector<1x64xf32> to vector<16x64xf32>
      %163 = arith.addf %160, %162 : vector<16x64xf32>
      %164 = vector.extract_strided_slice %163 {offsets = [0, 0], sizes = [16, 8], strides = [1, 1]} : vector<16x64xf32> to vector<16x8xf32>
      %165 = arith.truncf %164 : vector<16x8xf32> to vector<16x8xbf16>
      %c0_81 = arith.constant 0 : index
      %c0_82 = arith.constant 0 : index
      %c0_83 = arith.constant 0 : index
      %166 = vector.load %arg18[%c0_81, %c0_82, %c0_83] : memref<4x16x8xbf16, #tpu.memory_space<vmem>>, vector<1x16x8xbf16>
      %167 = vector.shape_cast %166 : vector<1x16x8xbf16> to vector<16x8xbf16>
      %168 = vector.shape_cast %165 : vector<16x8xbf16> to vector<1x16x8xbf16>
      tpu.vector_store %arg18[%c0_81, %c0_82, %c0_83], %168 {strides = array<i32>} : memref<4x16x8xbf16, #tpu.memory_space<vmem>>, vector<1x16x8xbf16>,
      %169 = vector.extract_strided_slice %163 {offsets = [0, 32], sizes = [16, 8], strides = [1, 1]} : vector<16x64xf32> to vector<16x8xf32>
      %170 = arith.truncf %169 : vector<16x8xf32> to vector<16x8xbf16>
      %c0_84 = arith.constant 0 : index
      %c0_85 = arith.constant 0 : index
      %c0_86 = arith.constant 0 : index
      %171 = vector.load %arg19[%c0_84, %c0_85, %c0_86] : memref<4x16x8xbf16, #tpu.memory_space<vmem>>, vector<1x16x8xbf16>
      %172 = vector.shape_cast %171 : vector<1x16x8xbf16> to vector<16x8xbf16>
      %173 = vector.shape_cast %170 : vector<16x8xbf16> to vector<1x16x8xbf16>
      tpu.vector_store %arg19[%c0_84, %c0_85, %c0_86], %173 {strides = array<i32>} : memref<4x16x8xbf16, #tpu.memory_space<vmem>>, vector<1x16x8xbf16>,
      %174 = vector.extract_strided_slice %163 {offsets = [0, 8], sizes = [16, 8], strides = [1, 1]} : vector<16x64xf32> to vector<16x8xf32>
      %175 = arith.truncf %174 : vector<16x8xf32> to vector<16x8xbf16>
      %c1_87 = arith.constant 1 : index
      %c0_88 = arith.constant 0 : index
      %c0_89 = arith.constant 0 : index
      %176 = vector.load %arg18[%c1_87, %c0_88, %c0_89] : memref<4x16x8xbf16, #tpu.memory_space<vmem>>, vector<1x16x8xbf16>
      %177 = vector.shape_cast %176 : vector<1x16x8xbf16> to vector<16x8xbf16>
      %178 = vector.shape_cast %175 : vector<16x8xbf16> to vector<1x16x8xbf16>
      tpu.vector_store %arg18[%c1_87, %c0_88, %c0_89], %178 {strides = array<i32>} : memref<4x16x8xbf16, #tpu.memory_space<vmem>>, vector<1x16x8xbf16>,
      %179 = vector.extract_strided_slice %163 {offsets = [0, 40], sizes = [16, 8], strides = [1, 1]} : vector<16x64xf32> to vector<16x8xf32>
      %180 = arith.truncf %179 : vector<16x8xf32> to vector<16x8xbf16>
      %c1_90 = arith.constant 1 : index
      %c0_91 = arith.constant 0 : index
      %c0_92 = arith.constant 0 : index
      %181 = vector.load %arg19[%c1_90, %c0_91, %c0_92] : memref<4x16x8xbf16, #tpu.memory_space<vmem>>, vector<1x16x8xbf16>
      %182 = vector.shape_cast %181 : vector<1x16x8xbf16> to vector<16x8xbf16>
      %183 = vector.shape_cast %180 : vector<16x8xbf16> to vector<1x16x8xbf16>
      tpu.vector_store %arg19[%c1_90, %c0_91, %c0_92], %183 {strides = array<i32>} : memref<4x16x8xbf16, #tpu.memory_space<vmem>>, vector<1x16x8xbf16>,
      %184 = vector.extract_strided_slice %163 {offsets = [0, 16], sizes = [16, 8], strides = [1, 1]} : vector<16x64xf32> to vector<16x8xf32>
      %185 = arith.truncf %184 : vector<16x8xf32> to vector<16x8xbf16>
      %c2_93 = arith.constant 2 : index
      %c0_94 = arith.constant 0 : index
      %c0_95 = arith.constant 0 : index
      %186 = vector.load %arg18[%c2_93, %c0_94, %c0_95] : memref<4x16x8xbf16, #tpu.memory_space<vmem>>, vector<1x16x8xbf16>
      %187 = vector.shape_cast %186 : vector<1x16x8xbf16> to vector<16x8xbf16>
      %188 = vector.shape_cast %185 : vector<16x8xbf16> to vector<1x16x8xbf16>
      tpu.vector_store %arg18[%c2_93, %c0_94, %c0_95], %188 {strides = array<i32>} : memref<4x16x8xbf16, #tpu.memory_space<vmem>>, vector<1x16x8xbf16>,
      %189 = vector.extract_strided_slice %163 {offsets = [0, 48], sizes = [16, 8], strides = [1, 1]} : vector<16x64xf32> to vector<16x8xf32>
      %190 = arith.truncf %189 : vector<16x8xf32> to vector<16x8xbf16>
      %c2_96 = arith.constant 2 : index
      %c0_97 = arith.constant 0 : index
      %c0_98 = arith.constant 0 : index
      %191 = vector.load %arg19[%c2_96, %c0_97, %c0_98] : memref<4x16x8xbf16, #tpu.memory_space<vmem>>, vector<1x16x8xbf16>
      %192 = vector.shape_cast %191 : vector<1x16x8xbf16> to vector<16x8xbf16>
      %193 = vector.shape_cast %190 : vector<16x8xbf16> to vector<1x16x8xbf16>
      tpu.vector_store %arg19[%c2_96, %c0_97, %c0_98], %193 {strides = array<i32>} : memref<4x16x8xbf16, #tpu.memory_space<vmem>>, vector<1x16x8xbf16>,
      %194 = vector.extract_strided_slice %163 {offsets = [0, 24], sizes = [16, 8], strides = [1, 1]} : vector<16x64xf32> to vector<16x8xf32>
      %195 = arith.truncf %194 : vector<16x8xf32> to vector<16x8xbf16>
      %c3_99 = arith.constant 3 : index
      %c0_100 = arith.constant 0 : index
      %c0_101 = arith.constant 0 : index
      %196 = vector.load %arg18[%c3_99, %c0_100, %c0_101] : memref<4x16x8xbf16, #tpu.memory_space<vmem>>, vector<1x16x8xbf16>
      %197 = vector.shape_cast %196 : vector<1x16x8xbf16> to vector<16x8xbf16>
      %198 = vector.shape_cast %195 : vector<16x8xbf16> to vector<1x16x8xbf16>
      tpu.vector_store %arg18[%c3_99, %c0_100, %c0_101], %198 {strides = array<i32>} : memref<4x16x8xbf16, #tpu.memory_space<vmem>>, vector<1x16x8xbf16>,
      %199 = vector.extract_strided_slice %163 {offsets = [0, 56], sizes = [16, 8], strides = [1, 1]} : vector<16x64xf32> to vector<16x8xf32>
      %200 = arith.truncf %199 : vector<16x8xf32> to vector<16x8xbf16>
      %c3_102 = arith.constant 3 : index
      %c0_103 = arith.constant 0 : index
      %c0_104 = arith.constant 0 : index
      %201 = vector.load %arg19[%c3_102, %c0_103, %c0_104] : memref<4x16x8xbf16, #tpu.memory_space<vmem>>, vector<1x16x8xbf16>
      %202 = vector.shape_cast %201 : vector<1x16x8xbf16> to vector<16x8xbf16>
      %203 = vector.shape_cast %200 : vector<16x8xbf16> to vector<1x16x8xbf16>
      tpu.vector_store %arg19[%c3_102, %c0_103, %c0_104], %203 {strides = array<i32>} : memref<4x16x8xbf16, #tpu.memory_space<vmem>>, vector<1x16x8xbf16>,
    } else {
    }
    %c8_i32 = arith.constant 8 : i32
    %5 = arith.muli %arg1, %c8_i32 : i32
    %6 = tpu.assume_multiple %5, 8 : i32
    %c0_4 = arith.constant 0 : index
    %7 = arith.index_cast %6 : i32 to index
    %c0_5 = arith.constant 0 : index
    %8 = vector.load %arg2[%c0_4, %7, %c0_5] : memref<1x16x32xf32, #tpu.memory_space<vmem>>, vector<1x8x32xf32>
    %9 = vector.shape_cast %8 : vector<1x8x32xf32> to vector<8x32xf32>
    %cst = arith.constant dense<0.000000e+00> : vector<8xf32>
    %10 = vector.multi_reduction <add>, %9, %cst [1] : vector<8x32xf32> to vector<8xf32>
    %11 = vector.shape_cast %10 : vector<8xf32> to vector<8x1xf32>
    %cst_6 = arith.constant 3.200000e+01 : f32
    %12 = vector.broadcast %cst_6 : f32 to vector<8x1xf32>
    %13 = arith.divf %11, %12 : vector<8x1xf32>
    %14 = vector.broadcast %13 : vector<8x1xf32> to vector<8x32xf32>
    %15 = arith.subf %9, %14 : vector<8x32xf32>
    %16 = arith.mulf %15, %15 : vector<8x32xf32>
    %cst_7 = arith.constant dense<0.000000e+00> : vector<8xf32>
    %17 = vector.multi_reduction <add>, %16, %cst_7 [1] : vector<8x32xf32> to vector<8xf32>
    %18 = vector.shape_cast %17 : vector<8xf32> to vector<8x1xf32>
    %cst_8 = arith.constant 0.0322580636 : f32
    %19 = vector.broadcast %cst_8 : f32 to vector<8x1xf32>
    %20 = arith.mulf %18, %19 : vector<8x1xf32>
    %21 = math.sqrt %20 : vector<8x1xf32>
    %22 = vector.broadcast %13 : vector<8x1xf32> to vector<8x32xf32>
    %23 = arith.subf %9, %22 : vector<8x32xf32>
    %cst_9 = arith.constant 9.99999997E-7 : f32
    %24 = vector.broadcast %cst_9 : f32 to vector<8x1xf32>
    %25 = arith.addf %21, %24 : vector<8x1xf32>
    %26 = vector.broadcast %25 : vector<8x1xf32> to vector<8x32xf32>
    %27 = arith.divf %23, %26 : vector<8x32xf32>
    %28 = vector.broadcast %0 : vector<1x32xf32> to vector<8x32xf32>
    %29 = arith.mulf %28, %27 : vector<8x32xf32>
    %30 = vector.broadcast %1 : vector<1x32xf32> to vector<8x32xf32>
    %31 = arith.addf %29, %30 : vector<8x32xf32>
    %32 = arith.truncf %31 : vector<8x32xf32> to vector<8x32xbf16>
    %c0_10 = arith.constant 0 : index
    %c0_11 = arith.constant 0 : index
    %33 = vector.load %arg5[%c0_10, %c0_11] : memref<32x32xbf16, #tpu.memory_space<vmem>>, vector<32x32xbf16>
    %cst_12 = arith.constant dense<0.000000e+00> : vector<8x32xf32>
    %34 = tpu.matmul %32, %33, %cst_12 {dimension_numbers = #tpu.dot_dimension_numbers<[1], [0], [0], [1], [0, 0, 1, 1], [], []>} : vector<8x32xbf16>, vector<32x32xbf16>, vector<8x32xf32> -> vector<8x32xf32>
    %c0_13 = arith.constant 0 : index
    %c0_14 = arith.constant 0 : index
    %35 = vector.load %arg6[%c0_13, %c0_14] : memref<1x32xf32, #tpu.memory_space<vmem>>, vector<1x32xf32>
    %36 = vector.broadcast %35 : vector<1x32xf32> to vector<8x32xf32>
    %37 = arith.addf %34, %36 : vector<8x32xf32>
    %38 = vector.extract_strided_slice %37 {offsets = [0, 0], sizes = [8, 8], strides = [1, 1]} : vector<8x32xf32> to vector<8x8xf32>
    %39 = arith.truncf %38 : vector<8x8xf32> to vector<8x8xbf16>
    %c0_15 = arith.constant 0 : index
    %c0_16 = arith.constant 0 : index
    %c0_17 = arith.constant 0 : index
    %40 = vector.load %arg20[%c0_15, %c0_16, %c0_17] : memref<4x8x8xbf16, #tpu.memory_space<vmem>>, vector<1x8x8xbf16>
    %41 = vector.shape_cast %40 : vector<1x8x8xbf16> to vector<8x8xbf16>
    %42 = vector.shape_cast %39 : vector<8x8xbf16> to vector<1x8x8xbf16>
    tpu.vector_store %arg20[%c0_15, %c0_16, %c0_17], %42 {strides = array<i32>} : memref<4x8x8xbf16, #tpu.memory_space<vmem>>, vector<1x8x8xbf16>,
    %43 = vector.extract_strided_slice %37 {offsets = [0, 8], sizes = [8, 8], strides = [1, 1]} : vector<8x32xf32> to vector<8x8xf32>
    %44 = arith.truncf %43 : vector<8x8xf32> to vector<8x8xbf16>
    %c1 = arith.constant 1 : index
    %c0_18 = arith.constant 0 : index
    %c0_19 = arith.constant 0 : index
    %45 = vector.load %arg20[%c1, %c0_18, %c0_19] : memref<4x8x8xbf16, #tpu.memory_space<vmem>>, vector<1x8x8xbf16>
    %46 = vector.shape_cast %45 : vector<1x8x8xbf16> to vector<8x8xbf16>
    %47 = vector.shape_cast %44 : vector<8x8xbf16> to vector<1x8x8xbf16>
    tpu.vector_store %arg20[%c1, %c0_18, %c0_19], %47 {strides = array<i32>} : memref<4x8x8xbf16, #tpu.memory_space<vmem>>, vector<1x8x8xbf16>,
    %48 = vector.extract_strided_slice %37 {offsets = [0, 16], sizes = [8, 8], strides = [1, 1]} : vector<8x32xf32> to vector<8x8xf32>
    %49 = arith.truncf %48 : vector<8x8xf32> to vector<8x8xbf16>
    %c2 = arith.constant 2 : index
    %c0_20 = arith.constant 0 : index
    %c0_21 = arith.constant 0 : index
    %50 = vector.load %arg20[%c2, %c0_20, %c0_21] : memref<4x8x8xbf16, #tpu.memory_space<vmem>>, vector<1x8x8xbf16>
    %51 = vector.shape_cast %50 : vector<1x8x8xbf16> to vector<8x8xbf16>
    %52 = vector.shape_cast %49 : vector<8x8xbf16> to vector<1x8x8xbf16>
    tpu.vector_store %arg20[%c2, %c0_20, %c0_21], %52 {strides = array<i32>} : memref<4x8x8xbf16, #tpu.memory_space<vmem>>, vector<1x8x8xbf16>,
    %53 = vector.extract_strided_slice %37 {offsets = [0, 24], sizes = [8, 8], strides = [1, 1]} : vector<8x32xf32> to vector<8x8xf32>
    %54 = arith.truncf %53 : vector<8x8xf32> to vector<8x8xbf16>
    %c3 = arith.constant 3 : index
    %c0_22 = arith.constant 0 : index
    %c0_23 = arith.constant 0 : index
    %55 = vector.load %arg20[%c3, %c0_22, %c0_23] : memref<4x8x8xbf16, #tpu.memory_space<vmem>>, vector<1x8x8xbf16>
    %56 = vector.shape_cast %55 : vector<1x8x8xbf16> to vector<8x8xbf16>
    %57 = vector.shape_cast %54 : vector<8x8xbf16> to vector<1x8x8xbf16>
    tpu.vector_store %arg20[%c3, %c0_22, %c0_23], %57 {strides = array<i32>} : memref<4x8x8xbf16, #tpu.memory_space<vmem>>, vector<1x8x8xbf16>,
    %c0_24 = arith.constant 0 : index
    %c0_25 = arith.constant 0 : index
    %c0_26 = arith.constant 0 : index
    %58 = vector.load %arg20[%c0_24, %c0_25, %c0_26] : memref<4x8x8xbf16, #tpu.memory_space<vmem>>, vector<4x8x8xbf16>
    %cst_27 = arith.constant 0xFF800000 : f32
    %59 = vector.broadcast %cst_27 : f32 to vector<4x8x1xf32>
    %cst_28 = arith.constant 0.000000e+00 : f32
    %60 = vector.broadcast %cst_28 : f32 to vector<4x8x1xf32>
    %cst_29 = arith.constant 0.000000e+00 : f32
    %61 = vector.broadcast %cst_29 : f32 to vector<4x8x8xf32>
    %c0_i32_30 = arith.constant 0 : i32
    %c2_i32 = arith.constant 2 : i32
    %62 = arith.addi %c0_i32_30, %c2_i32 : i32
    %c1_i32 = arith.constant 1 : i32
    %63:3 = scf.for %arg22 = %c0_i32_30 to %62 step %c1_i32 iter_args(%arg23 = %59, %arg24 = %60, %arg25 = %61) -> (vector<4x8x1xf32>, vector<4x8x1xf32>, vector<4x8x8xf32>)  : i32 {
      %c8_i32_68 = arith.constant 8 : i32
      %134 = arith.muli %arg22, %c8_i32_68 : i32
      %135 = tpu.assume_multiple %134, 8 : i32
      %c0_69 = arith.constant 0 : index
      %136 = arith.index_cast %135 : i32 to index
      %c0_70 = arith.constant 0 : index
      %137 = vector.load %arg18[%c0_69, %136, %c0_70] : memref<4x16x8xbf16, #tpu.memory_space<vmem>>, vector<4x8x8xbf16>
      %c0_71 = arith.constant 0 : index
      %138 = arith.index_cast %135 : i32 to index
      %c0_72 = arith.constant 0 : index
      %139 = vector.load %arg19[%c0_71, %138, %c0_72] : memref<4x16x8xbf16, #tpu.memory_space<vmem>>, vector<4x8x8xbf16>
      "tpu.trace_start"() <{level = 10 : i32, message = "hqd,hkd->hqk"}> : () -> ()
      %cst_73 = arith.constant dense<0.000000e+00> : vector<4x8x8xf32>
      %140 = tpu.matmul %58, %137, %cst_73 {dimension_numbers = #tpu.dot_dimension_numbers<[2], [2], [1], [1], [0, 0, 0, 1, 1, 1], [0], [0]>} : vector<4x8x8xbf16>, vector<4x8x8xbf16>, vector<4x8x8xf32> -> vector<4x8x8xf32>
      "tpu.trace_stop"() : () -> ()
      %cst_74 = arith.constant dense<0xFF800000> : vector<4x8xf32>
      %141 = vector.multi_reduction <maximumf>, %140, %cst_74 [2] : vector<4x8x8xf32> to vector<4x8xf32>
      %142 = vector.shape_cast %141 : vector<4x8xf32> to vector<4x8x1xf32>
      %143 = arith.maximumf %arg23, %142 : vector<4x8x1xf32>
      %144 = arith.subf %arg23, %143 : vector<4x8x1xf32>
      %145 = math.exp %144 : vector<4x8x1xf32>
      %146 = vector.broadcast %143 : vector<4x8x1xf32> to vector<4x8x8xf32>
      %147 = arith.subf %140, %146 : vector<4x8x8xf32>
      %148 = math.exp %147 : vector<4x8x8xf32>
      %149 = arith.mulf %145, %arg24 : vector<4x8x1xf32>
      %cst_75 = arith.constant dense<0.000000e+00> : vector<4x8xf32>
      %150 = vector.multi_reduction <add>, %148, %cst_75 [2] : vector<4x8x8xf32> to vector<4x8xf32>
      %151 = vector.shape_cast %150 : vector<4x8xf32> to vector<4x8x1xf32>
      %152 = arith.addf %149, %151 : vector<4x8x1xf32>
      %153 = vector.broadcast %145 : vector<4x8x1xf32> to vector<4x8x8xf32>
      %154 = arith.mulf %153, %arg25 : vector<4x8x8xf32>
      %155 = arith.truncf %148 : vector<4x8x8xf32> to vector<4x8x8xbf16>
      "tpu.trace_start"() <{level = 10 : i32, message = "hqk,hkd->hqd"}> : () -> ()
      %cst_76 = arith.constant dense<0.000000e+00> : vector<4x8x8xf32>
      %156 = tpu.matmul %155, %139, %cst_76 {dimension_numbers = #tpu.dot_dimension_numbers<[2], [1], [1], [2], [0, 0, 0, 1, 1, 2], [0], [0]>} : vector<4x8x8xbf16>, vector<4x8x8xbf16>, vector<4x8x8xf32> -> vector<4x8x8xf32>
      "tpu.trace_stop"() : () -> ()
      %157 = arith.addf %154, %156 : vector<4x8x8xf32>
      scf.yield %143, %152, %157 : vector<4x8x1xf32>, vector<4x8x1xf32>, vector<4x8x8xf32>
    }
    %c2_i32_31 = arith.constant 2 : i32
    %64 = tpu.reciprocal %63#1 {approx = true} : vector<4x8x1xf32> -> vector<4x8x1xf32>
    %65 = vector.broadcast %64 : vector<4x8x1xf32> to vector<4x8x8xf32>
    %66 = arith.mulf %63#2, %65 : vector<4x8x8xf32>
    %67 = vector.extract_strided_slice %66 {offsets = [0, 0, 0], sizes = [1, 8, 8], strides = [1, 1, 1]} : vector<4x8x8xf32> to vector<1x8x8xf32>
    %68 = vector.shape_cast %67 : vector<1x8x8xf32> to vector<8x8xf32>
    %69 = arith.truncf %68 : vector<8x8xf32> to vector<8x8xbf16>
    %c0_32 = arith.constant 0 : index
    %c0_33 = arith.constant 0 : index
    %70 = vector.load %arg21[%c0_32, %c0_33] : memref<8x32xbf16, #tpu.memory_space<vmem>>, vector<8x8xbf16>
    tpu.vector_store %arg21[%c0_32, %c0_33], %69 {strides = array<i32>} : memref<8x32xbf16, #tpu.memory_space<vmem>>, vector<8x8xbf16>,
    %71 = vector.extract_strided_slice %66 {offsets = [1, 0, 0], sizes = [1, 8, 8], strides = [1, 1, 1]} : vector<4x8x8xf32> to vector<1x8x8xf32>
    %72 = vector.shape_cast %71 : vector<1x8x8xf32> to vector<8x8xf32>
    %73 = arith.truncf %72 : vector<8x8xf32> to vector<8x8xbf16>
    %c0_34 = arith.constant 0 : index
    %c8 = arith.constant 8 : index
    %74 = vector.load %arg21[%c0_34, %c8] : memref<8x32xbf16, #tpu.memory_space<vmem>>, vector<8x8xbf16>
    tpu.vector_store %arg21[%c0_34, %c8], %73 {strides = array<i32>} : memref<8x32xbf16, #tpu.memory_space<vmem>>, vector<8x8xbf16>,
    %75 = vector.extract_strided_slice %66 {offsets = [2, 0, 0], sizes = [1, 8, 8], strides = [1, 1, 1]} : vector<4x8x8xf32> to vector<1x8x8xf32>
    %76 = vector.shape_cast %75 : vector<1x8x8xf32> to vector<8x8xf32>
    %77 = arith.truncf %76 : vector<8x8xf32> to vector<8x8xbf16>
    %c0_35 = arith.constant 0 : index
    %c16 = arith.constant 16 : index
    %78 = vector.load %arg21[%c0_35, %c16] : memref<8x32xbf16, #tpu.memory_space<vmem>>, vector<8x8xbf16>
    tpu.vector_store %arg21[%c0_35, %c16], %77 {strides = array<i32>} : memref<8x32xbf16, #tpu.memory_space<vmem>>, vector<8x8xbf16>,
    %79 = vector.extract_strided_slice %66 {offsets = [3, 0, 0], sizes = [1, 8, 8], strides = [1, 1, 1]} : vector<4x8x8xf32> to vector<1x8x8xf32>
    %80 = vector.shape_cast %79 : vector<1x8x8xf32> to vector<8x8xf32>
    %81 = arith.truncf %80 : vector<8x8xf32> to vector<8x8xbf16>
    %c0_36 = arith.constant 0 : index
    %c24 = arith.constant 24 : index
    %82 = vector.load %arg21[%c0_36, %c24] : memref<8x32xbf16, #tpu.memory_space<vmem>>, vector<8x8xbf16>
    tpu.vector_store %arg21[%c0_36, %c24], %81 {strides = array<i32>} : memref<8x32xbf16, #tpu.memory_space<vmem>>, vector<8x8xbf16>,
    %c0_37 = arith.constant 0 : index
    %c0_38 = arith.constant 0 : index
    %83 = vector.load %arg21[%c0_37, %c0_38] : memref<8x32xbf16, #tpu.memory_space<vmem>>, vector<8x32xbf16>
    %c0_39 = arith.constant 0 : index
    %c0_40 = arith.constant 0 : index
    %84 = vector.load %arg9[%c0_39, %c0_40] : memref<32x32xbf16, #tpu.memory_space<vmem>>, vector<32x32xbf16>
    %cst_41 = arith.constant dense<0.000000e+00> : vector<8x32xf32>
    %85 = tpu.matmul %83, %84, %cst_41 {dimension_numbers = #tpu.dot_dimension_numbers<[1], [0], [0], [1], [0, 0, 1, 1], [], []>} : vector<8x32xbf16>, vector<32x32xbf16>, vector<8x32xf32> -> vector<8x32xf32>
    %c0_42 = arith.constant 0 : index
    %c0_43 = arith.constant 0 : index
    %86 = vector.load %arg10[%c0_42, %c0_43] : memref<1x32xf32, #tpu.memory_space<vmem>>, vector<1x32xf32>
    %87 = vector.broadcast %86 : vector<1x32xf32> to vector<8x32xf32>
    %88 = arith.addf %85, %87 : vector<8x32xf32>
    %89 = arith.addf %9, %88 : vector<8x32xf32>
    %c0_44 = arith.constant 0 : index
    %c0_45 = arith.constant 0 : index
    %90 = vector.load %arg11[%c0_44, %c0_45] : memref<1x32xf32, #tpu.memory_space<vmem>>, vector<1x32xf32>
    %c0_46 = arith.constant 0 : index
    %c0_47 = arith.constant 0 : index
    %91 = vector.load %arg12[%c0_46, %c0_47] : memref<1x32xf32, #tpu.memory_space<vmem>>, vector<1x32xf32>
    %cst_48 = arith.constant dense<0.000000e+00> : vector<8xf32>
    %92 = vector.multi_reduction <add>, %89, %cst_48 [1] : vector<8x32xf32> to vector<8xf32>
    %93 = vector.shape_cast %92 : vector<8xf32> to vector<8x1xf32>
    %cst_49 = arith.constant 3.200000e+01 : f32
    %94 = vector.broadcast %cst_49 : f32 to vector<8x1xf32>
    %95 = arith.divf %93, %94 : vector<8x1xf32>
    %96 = vector.broadcast %95 : vector<8x1xf32> to vector<8x32xf32>
    %97 = arith.subf %89, %96 : vector<8x32xf32>
    %98 = arith.mulf %97, %97 : vector<8x32xf32>
    %cst_50 = arith.constant dense<0.000000e+00> : vector<8xf32>
    %99 = vector.multi_reduction <add>, %98, %cst_50 [1] : vector<8x32xf32> to vector<8xf32>
    %100 = vector.shape_cast %99 : vector<8xf32> to vector<8x1xf32>
    %cst_51 = arith.constant 0.0322580636 : f32
    %101 = vector.broadcast %cst_51 : f32 to vector<8x1xf32>
    %102 = arith.mulf %100, %101 : vector<8x1xf32>
    %103 = math.sqrt %102 : vector<8x1xf32>
    %104 = vector.broadcast %95 : vector<8x1xf32> to vector<8x32xf32>
    %105 = arith.subf %89, %104 : vector<8x32xf32>
    %cst_52 = arith.constant 9.99999997E-7 : f32
    %106 = vector.broadcast %cst_52 : f32 to vector<8x1xf32>
    %107 = arith.addf %103, %106 : vector<8x1xf32>
    %108 = vector.broadcast %107 : vector<8x1xf32> to vector<8x32xf32>
    %109 = arith.divf %105, %108 : vector<8x32xf32>
    %110 = vector.broadcast %90 : vector<1x32xf32> to vector<8x32xf32>
    %111 = arith.mulf %110, %109 : vector<8x32xf32>
    %112 = vector.broadcast %91 : vector<1x32xf32> to vector<8x32xf32>
    %113 = arith.addf %111, %112 : vector<8x32xf32>
    %114 = arith.truncf %113 : vector<8x32xf32> to vector<8x32xbf16>
    %cst_53 = arith.constant 0.000000e+00 : f32
    %115 = vector.broadcast %cst_53 : f32 to vector<8x32xf32>
    %c0_54 = arith.constant 0 : index
    %c0_55 = arith.constant 0 : index
    %116 = vector.load %arg13[%c0_54, %c0_55] : memref<32x64xbf16, #tpu.memory_space<vmem>>, vector<32x64xbf16>
    %cst_56 = arith.constant dense<0.000000e+00> : vector<8x64xf32>
    %117 = tpu.matmul %114, %116, %cst_56 {dimension_numbers = #tpu.dot_dimension_numbers<[1], [0], [0], [1], [0, 0, 1, 1], [], []>} : vector<8x32xbf16>, vector<32x64xbf16>, vector<8x64xf32> -> vector<8x64xf32>
    %c0_57 = arith.constant 0 : index
    %c0_58 = arith.constant 0 : index
    %118 = vector.load %arg14[%c0_57, %c0_58] : memref<1x64xf32, #tpu.memory_space<vmem>>, vector<1x64xf32>
    %119 = vector.broadcast %118 : vector<1x64xf32> to vector<8x64xf32>
    %120 = arith.addf %117, %119 : vector<8x64xf32>
    %cst_59 = arith.constant 0.000000e+00 : f32
    %121 = vector.broadcast %cst_59 : f32 to vector<8x64xf32>
    %122 = arith.maximumf %120, %121 : vector<8x64xf32>
    %123 = arith.truncf %122 : vector<8x64xf32> to vector<8x64xbf16>
    %c0_60 = arith.constant 0 : index
    %c0_61 = arith.constant 0 : index
    %124 = vector.load %arg15[%c0_60, %c0_61] : memref<64x32xbf16, #tpu.memory_space<vmem>>, vector<64x32xbf16>
    %cst_62 = arith.constant dense<0.000000e+00> : vector<8x32xf32>
    %125 = tpu.matmul %123, %124, %cst_62 {dimension_numbers = #tpu.dot_dimension_numbers<[1], [0], [0], [1], [0, 0, 1, 1], [], []>} : vector<8x64xbf16>, vector<64x32xbf16>, vector<8x32xf32> -> vector<8x32xf32>
    %126 = arith.addf %115, %125 : vector<8x32xf32>
    %c0_63 = arith.constant 0 : index
    %c0_64 = arith.constant 0 : index
    %127 = vector.load %arg16[%c0_63, %c0_64] : memref<1x32xf32, #tpu.memory_space<vmem>>, vector<1x32xf32>
    %128 = vector.broadcast %127 : vector<1x32xf32> to vector<8x32xf32>
    %129 = arith.addf %126, %128 : vector<8x32xf32>
    %130 = arith.addf %89, %129 : vector<8x32xf32>
    %c0_65 = arith.constant 0 : index
    %c0_66 = arith.constant 0 : index
    %c0_67 = arith.constant 0 : index
    %131 = vector.load %arg17[%c0_65, %c0_66, %c0_67] : memref<1x8x32xf32, #tpu.memory_space<vmem>>, vector<1x8x32xf32>
    %132 = vector.shape_cast %131 : vector<1x8x32xf32> to vector<8x32xf32>
    %133 = vector.shape_cast %130 : vector<8x32xf32> to vector<1x8x32xf32>
    tpu.vector_store %arg17[%c0_65, %c0_66, %c0_67], %133 {strides = array<i32>} : memref<1x8x32xf32, #tpu.memory_space<vmem>>, vector<1x8x32xf32>,
    return
  }
  func.func @transform_0(%arg0: i32, %arg1: i32) -> (i32, i32, i32) {
    %c0_i32 = arith.constant 0 : i32
    %c0_i32_0 = arith.constant 0 : i32
    %c0_i32_1 = arith.constant 0 : i32
    return %arg0, %c0_i32, %c0_i32_0 : i32, i32, i32
  }
  func.func @transform_1(%arg0: i32, %arg1: i32) -> (i32, i32) {
    %c0_i32 = arith.constant 0 : i32
    %c0_i32_0 = arith.constant 0 : i32
    %c0_i32_1 = arith.constant 0 : i32
    return %c0_i32, %c0_i32_0 : i32, i32
  }
  func.func @transform_2(%arg0: i32, %arg1: i32) -> (i32, i32) {
    %c0_i32 = arith.constant 0 : i32
    %c0_i32_0 = arith.constant 0 : i32
    %c0_i32_1 = arith.constant 0 : i32
    return %c0_i32, %c0_i32_0 : i32, i32
  }
  func.func @transform_3(%arg0: i32, %arg1: i32) -> (i32, i32) {
    %c0_i32 = arith.constant 0 : i32
    %c0_i32_0 = arith.constant 0 : i32
    %c0_i32_1 = arith.constant 0 : i32
    return %c0_i32, %c0_i32_0 : i32, i32
  }
  func.func @transform_4(%arg0: i32, %arg1: i32) -> (i32, i32) {
    %c0_i32 = arith.constant 0 : i32
    %c0_i32_0 = arith.constant 0 : i32
    %c0_i32_1 = arith.constant 0 : i32
    return %c0_i32, %c0_i32_0 : i32, i32
  }
  func.func @transform_5(%arg0: i32, %arg1: i32) -> (i32, i32) {
    %c0_i32 = arith.constant 0 : i32
    %c0_i32_0 = arith.constant 0 : i32
    %c0_i32_1 = arith.constant 0 : i32
    return %c0_i32, %c0_i32_0 : i32, i32
  }
  func.func @transform_6(%arg0: i32, %arg1: i32) -> (i32, i32) {
    %c0_i32 = arith.constant 0 : i32
    %c0_i32_0 = arith.constant 0 : i32
    %c0_i32_1 = arith.constant 0 : i32
    return %c0_i32, %c0_i32_0 : i32, i32
  }
  func.func @transform_7(%arg0: i32, %arg1: i32) -> (i32, i32) {
    %c0_i32 = arith.constant 0 : i32
    %c0_i32_0 = arith.constant 0 : i32
    %c0_i32_1 = arith.constant 0 : i32
    return %c0_i32, %c0_i32_0 : i32, i32
  }
  func.func @transform_8(%arg0: i32, %arg1: i32) -> (i32, i32) {
    %c0_i32 = arith.constant 0 : i32
    %c0_i32_0 = arith.constant 0 : i32
    %c0_i32_1 = arith.constant 0 : i32
    return %c0_i32, %c0_i32_0 : i32, i32
  }
  func.func @transform_9(%arg0: i32, %arg1: i32) -> (i32, i32) {
    %c0_i32 = arith.constant 0 : i32
    %c0_i32_0 = arith.constant 0 : i32
    %c0_i32_1 = arith.constant 0 : i32
    return %c0_i32, %c0_i32_0 : i32, i32
  }
  func.func @transform_10(%arg0: i32, %arg1: i32) -> (i32, i32) {
    %c0_i32 = arith.constant 0 : i32
    %c0_i32_0 = arith.constant 0 : i32
    %c0_i32_1 = arith.constant 0 : i32
    return %c0_i32, %c0_i32_0 : i32, i32
  }
  func.func @transform_11(%arg0: i32, %arg1: i32) -> (i32, i32) {
    %c0_i32 = arith.constant 0 : i32
    %c0_i32_0 = arith.constant 0 : i32
    %c0_i32_1 = arith.constant 0 : i32
    return %c0_i32, %c0_i32_0 : i32, i32
  }
  func.func @transform_12(%arg0: i32, %arg1: i32) -> (i32, i32) {
    %c0_i32 = arith.constant 0 : i32
    %c0_i32_0 = arith.constant 0 : i32
    %c0_i32_1 = arith.constant 0 : i32
    return %c0_i32, %c0_i32_0 : i32, i32
  }
  func.func @transform_13(%arg0: i32, %arg1: i32) -> (i32, i32) {
    %c0_i32 = arith.constant 0 : i32
    %c0_i32_0 = arith.constant 0 : i32
    %c0_i32_1 = arith.constant 0 : i32
    return %c0_i32, %c0_i32_0 : i32, i32
  }
  func.func @transform_14(%arg0: i32, %arg1: i32) -> (i32, i32) {
    %c0_i32 = arith.constant 0 : i32
    %c0_i32_0 = arith.constant 0 : i32
    %c0_i32_1 = arith.constant 0 : i32
    return %c0_i32, %c0_i32_0 : i32, i32
  }
  func.func @transform_15(%arg0: i32, %arg1: i32) -> (i32, i32, i32) {
    %c0_i32 = arith.constant 0 : i32
    %c0_i32_0 = arith.constant 0 : i32
    return %arg0, %arg1, %c0_i32 : i32, i32, i32
  }
}

</mosaic_0001>

<llo_original>
// kernel: tpu_custom_call.1
$region0: #{tpu_custom_call.1}
  #allocation0 [shape = 'u32[]', space=smem, size = 0x4, offset = 0x4, fixed_abs, tag = 'smem constant byte address 0x4 - core index']
  #allocation1 [shape = 'u32[72,128]{1,0:T(1,128)}', space=vmem, size = 0x9000, scoped, tag = 'internal scratch']
  #allocation2 [shape = 'bf16[4,16,8]{2,1,0:T(8,128)(2,1)}', space=vmem, size = 0x4000, scoped, tag = 'scratch operand']
  #allocation3 [shape = 'bf16[4,16,8]{2,1,0:T(8,128)(2,1)}', space=vmem, size = 0x4000, scoped, tag = 'scratch operand']
  #allocation4 [shape = 'bf16[4,8,8]{2,1,0:T(8,128)(2,1)}', space=vmem, size = 0x2000, scoped, tag = 'scratch operand']
  #allocation5 [shape = 'bf16[8,32]{1,0:T(8,128)(2,1)}', space=vmem, size = 0x800, scoped, tag = 'scratch operand']
  %s0 = inlined_call_operand.vmem [shape: f32[2,16,32], index: 0, kind: input, shape index: {}]
  %s1 = inlined_call_operand.hbm [shape: f32[1,32], index: 1, kind: input, shape index: {}]
  %s2 = inlined_call_operand.vmem [shape: f32[1,32], index: 2, kind: input, shape index: {}]
  %s3 = inlined_call_operand.vmem [shape: bf16[32,32], index: 3, kind: input, shape index: {}]
  %s4 = inlined_call_operand.vmem [shape: f32[1,32], index: 4, kind: input, shape index: {}]
  %s5 = inlined_call_operand.hbm [shape: bf16[32,64], index: 5, kind: input, shape index: {}]
  %s6 = inlined_call_operand.vmem [shape: f32[1,64], index: 6, kind: input, shape index: {}]
  %s7 = inlined_call_operand.hbm [shape: bf16[32,32], index: 7, kind: input, shape index: {}]
  %s8 = inlined_call_operand.vmem [shape: f32[1,32], index: 8, kind: input, shape index: {}]
  %s9 = inlined_call_operand.vmem [shape: f32[1,32], index: 9, kind: input, shape index: {}]
  %s10 = inlined_call_operand.vmem [shape: f32[1,32], index: 10, kind: input, shape index: {}]
  %s11 = inlined_call_operand.hbm [shape: bf16[32,64], index: 11, kind: input, shape index: {}]
  %s12 = inlined_call_operand.vmem [shape: f32[1,64], index: 12, kind: input, shape index: {}]
  %s13 = inlined_call_operand.vmem [shape: bf16[64,32], index: 13, kind: input, shape index: {}]
  %s14 = inlined_call_operand.vmem [shape: f32[1,32], index: 14, kind: input, shape index: {}]
  %s15 = inlined_call_operand.hbm [shape: f32[2,16,32], index: 15, kind: output, shape index: {}]
  %s16 = sld [smem:[#allocation0]]
  $region120: #{tpu_custom_call.1} parent=0
    _
  %s18 = ssub.s32 1, %s16
  %s19 = scalar_select 0, %s18, %s16
  $region1: #{tpu_custom_call.1} parent=0
    #allocation6 [shape = 'u8[512]{0}', space=vmem, size = 0x400, scoped, tag = 'input window, operand 1, single buffered']
    #allocation7 [shape = 's32[2]{0}', space=sflag, size = 0x8, scoped, tag = 'scoped memory for tpu_custom_call.1']
    #allocation8 [shape = 's32[2]{0}', space=sflag, size = 0x8, scoped, tag = 'scoped memory for tpu_custom_call.1']
    #allocation9 [shape = 'u8[8192]{0}', space=vmem, size = 0x2000, scoped, tag = 'input window, operand 5, single buffered']
    #allocation10 [shape = 's32[1]{0}', space=sflag, size = 0x4, scoped, tag = 'scoped memory for tpu_custom_call.1']
    #allocation11 [shape = 'u8[8192]{0}', space=vmem, size = 0x2000, scoped, tag = 'input window, operand 7, single buffered']
    #allocation12 [shape = 'u8[8192]{0}', space=vmem, size = 0x2000, scoped, tag = 'input window, operand 11, single buffered']
    #allocation13 [shape = 's32[1]{0}', space=sflag, size = 0x4, scoped, tag = 'scoped memory for tpu_custom_call.1']
    #allocation14 [shape = 'u8[8192]{0}', space=vmem, size = 0x2000, scoped, tag = 'output window, operand 0']
    %20 = vsyncpa [#allocation7], 0
    %21 = vsyncpa [#allocation10], 0
    %22 = vsyncpa [#allocation13], 0
    %23 = vsyncpa [#allocation8], 0
    %s24 = scalar_lea.sflag [#allocation8], 1
    %25 = vsyncpa %s24, 0
    loop: start=0, step=1, limit=6
    $region2: #{tpu_custom_call.1} parent=1 // loop_pre_header
      _
    $region3: #{tpu_custom_call.1} parent=1 // loop_header
      %s27 = sphi 0, %s31
      %p28 = scmp.ge.s32.totalorder %s27, 6
      %s34 = sphi 0, %s46
      %s35 = sphi 0, %s42
      %s36 = sphi 0, %s34
      %s37 = sphi 0, %s35
      %s38 = sphi 0, %s36
      %s39 = sphi 0, %s37
      %s49 = sphi 0, %s51
      %s52 = sphi 0, %s49
      %s53 = sphi 0, %s52
      %s69 = sphi 0, %s53
      %s73 = sphi 0, %s73
      %s75 = sphi 0, %s73
      %s76 = sphi 0, %s75
      %s90 = sphi 0, %s76
      %s94 = sphi 0, %s94
      %s96 = sphi 0, %s94
      %s97 = sphi 0, %s96
      %s111 = sphi 0, %s97
      %s115 = sphi 0, %s115
      %s117 = sphi 0, %s115
      %s118 = sphi 0, %s117
      %s132 = sphi 0, %s118
      %s136 = sphi 0, %s136
      %s138 = sphi 0, %s136
      %s139 = sphi 0, %s138
      %s153 = sphi 0, %s139
      %s157 = sphi 0, %s157
      %s159 = sphi 0, %s157
      %s160 = sphi 0, %s159
      %s174 = sphi 0, %s160
      %s178 = sphi 0, %s178
      %s180 = sphi 0, %s178
      %s181 = sphi 0, %s180
      %s195 = sphi 0, %s181
      %s199 = sphi 0, %s199
      %s201 = sphi 0, %s199
      %s202 = sphi 0, %s201
      %s216 = sphi 0, %s202
      %s220 = sphi 0, %s220
      %s222 = sphi 0, %s220
      %s223 = sphi 0, %s222
      %s237 = sphi 0, %s223
      %s241 = sphi 0, %s241
      %s243 = sphi 0, %s241
      %s244 = sphi 0, %s243
      %s258 = sphi 0, %s244
      %s262 = sphi 0, %s262
      %s264 = sphi 0, %s262
      %s265 = sphi 0, %s264
      %s279 = sphi 0, %s265
      %s283 = sphi 0, %s283
      %s285 = sphi 0, %s283
      %s286 = sphi 0, %s285
      %s300 = sphi 0, %s286
      %s304 = sphi 0, %s304
      %s306 = sphi 0, %s304
      %s307 = sphi 0, %s306
      %s321 = sphi 0, %s307
      %s325 = sphi 0, %s325
      %s327 = sphi 0, %s325
      %s328 = sphi 0, %s327
      %s342 = sphi 0, %s328
      %s346 = sphi 0, %s346
      %s348 = sphi 0, %s346
      %s349 = sphi 0, %s348
      %s363 = sphi 0, %s349
      %s371 = sphi 0, %s373
      %s374 = sphi 0, %s371
      %s375 = sphi 0, %s374
      %s391 = sphi 0, %s375
    $region4: #{tpu_custom_call.1} parent=1 // loop_header_branch
      %30 = sbr.rel (%p28) target = $region8
    $region5: #{tpu_custom_call.1} parent=1 // loop_body
      %s32 = ssub.s32 %s27, 1
      %s33 = ssub.s32 %s27, 2
      %s40 = sadd.s32 1, %s35
      %p41 = scmp.ge.s32.totalorder %s40, 2
      %s42 = scalar_select %p41, 0, %s40
      %s43 = sadd.s32 1, %s34
      %s44 = scalar_select %p41, %s43, %s34
      %p45 = scmp.ge.s32.totalorder %s44, 2
      %s46 = scalar_select %p45, 0, %s44
      %s47 = ssub.s32 %s34, %s46
      %p48 = scmp.eq.s32.totalorder %s47, 0
      %s50 = sadd.s32 %s49, 1
      %s51 = scalar_select %p48, %s49, %s50
      %p54 = pneg %p48
      %p55 = scmp.eq.s32.totalorder %s27, 3
      %p56 = por %p54, %p55
      %p57 = scmp.ne.s32.totalorder %s49, %s52
      %p58 = scmp.eq.s32.totalorder %s27, 0
      %p59 = por %p57, %p58
      %p60 = scmp.ne.s32.totalorder %s49, %s52
      %p61 = scmp.eq.s32.totalorder %s32, 3
      %p62 = por %p60, %p61
      %p63 = scmp.ne.s32.totalorder %s52, %s53
      %p64 = scmp.eq.s32.totalorder %s32, 0
      %p65 = por %p63, %p64
      %p66 = scmp.ne.s32.totalorder %s52, %s53
      %p67 = scmp.eq.s32.totalorder %s33, 3
      %p68 = por %p66, %p67
      %p70 = scmp.ne.s32.totalorder %s53, %s69
      %p71 = scmp.eq.s32.totalorder %s33, 0
      %p72 = por %p70, %p71
      %s74 = sadd.s32 %s73, 1
      %p77 = scmp.eq.s32.totalorder %s27, 3
      %p78 = scmp.ne.s32.totalorder %s73, %s75
      %p79 = scmp.eq.s32.totalorder %s27, 0
      %p80 = por %p78, %p79
      %p81 = scmp.ne.s32.totalorder %s73, %s75
      %p82 = scmp.eq.s32.totalorder %s32, 3
      %p83 = por %p81, %p82
      %p84 = scmp.ne.s32.totalorder %s75, %s76
      %p85 = scmp.eq.s32.totalorder %s32, 0
      %p86 = por %p84, %p85
      %p87 = scmp.ne.s32.totalorder %s75, %s76
      %p88 = scmp.eq.s32.totalorder %s33, 3
      %p89 = por %p87, %p88
      %p91 = scmp.ne.s32.totalorder %s76, %s90
      %p92 = scmp.eq.s32.totalorder %s33, 0
      %p93 = por %p91, %p92
      %s95 = sadd.s32 %s94, 1
      %p98 = scmp.eq.s32.totalorder %s27, 3
      %p99 = scmp.ne.s32.totalorder %s94, %s96
      %p100 = scmp.eq.s32.totalorder %s27, 0
      %p101 = por %p99, %p100
      %p102 = scmp.ne.s32.totalorder %s94, %s96
      %p103 = scmp.eq.s32.totalorder %s32, 3
      %p104 = por %p102, %p103
      %p105 = scmp.ne.s32.totalorder %s96, %s97
      %p106 = scmp.eq.s32.totalorder %s32, 0
      %p107 = por %p105, %p106
      %p108 = scmp.ne.s32.totalorder %s96, %s97
      %p109 = scmp.eq.s32.totalorder %s33, 3
      %p110 = por %p108, %p109
      %p112 = scmp.ne.s32.totalorder %s97, %s111
      %p113 = scmp.eq.s32.totalorder %s33, 0
      %p114 = por %p112, %p113
      %s116 = sadd.s32 %s115, 1
      %p119 = scmp.eq.s32.totalorder %s27, 3
      %p120 = scmp.ne.s32.totalorder %s115, %s117
      %p121 = scmp.eq.s32.totalorder %s27, 0
      %p122 = por %p120, %p121
      %p123 = scmp.ne.s32.totalorder %s115, %s117
      %p124 = scmp.eq.s32.totalorder %s32, 3
      %p125 = por %p123, %p124
      %p126 = scmp.ne.s32.totalorder %s117, %s118
      %p127 = scmp.eq.s32.totalorder %s32, 0
      %p128 = por %p126, %p127
      %p129 = scmp.ne.s32.totalorder %s117, %s118
      %p130 = scmp.eq.s32.totalorder %s33, 3
      %p131 = por %p129, %p130
      %p133 = scmp.ne.s32.totalorder %s118, %s132
      %p134 = scmp.eq.s32.totalorder %s33, 0
      %p135 = por %p133, %p134
      %s137 = sadd.s32 %s136, 1
      %p140 = scmp.eq.s32.totalorder %s27, 3
      %p141 = scmp.ne.s32.totalorder %s136, %s138
      %p142 = scmp.eq.s32.totalorder %s27, 0
      %p143 = por %p141, %p142
      %p144 = scmp.ne.s32.totalorder %s136, %s138
      %p145 = scmp.eq.s32.totalorder %s32, 3
      %p146 = por %p144, %p145
      %p147 = scmp.ne.s32.totalorder %s138, %s139
      %p148 = scmp.eq.s32.totalorder %s32, 0
      %p149 = por %p147, %p148
      %p150 = scmp.ne.s32.totalorder %s138, %s139
      %p151 = scmp.eq.s32.totalorder %s33, 3
      %p152 = por %p150, %p151
      %p154 = scmp.ne.s32.totalorder %s139, %s153
      %p155 = scmp.eq.s32.totalorder %s33, 0
      %p156 = por %p154, %p155
      %s158 = sadd.s32 %s157, 1
      %p161 = scmp.eq.s32.totalorder %s27, 3
      %p162 = scmp.ne.s32.totalorder %s157, %s159
      %p163 = scmp.eq.s32.totalorder %s27, 0
      %p164 = por %p162, %p163
      %p165 = scmp.ne.s32.totalorder %s157, %s159
      %p166 = scmp.eq.s32.totalorder %s32, 3
      %p167 = por %p165, %p166
      %p168 = scmp.ne.s32.totalorder %s159, %s160
      %p169 = scmp.eq.s32.totalorder %s32, 0
      %p170 = por %p168, %p169
      %p171 = scmp.ne.s32.totalorder %s159, %s160
      %p172 = scmp.eq.s32.totalorder %s33, 3
      %p173 = por %p171, %p172
      %p175 = scmp.ne.s32.totalorder %s160, %s174
      %p176 = scmp.eq.s32.totalorder %s33, 0
      %p177 = por %p175, %p176
      %s179 = sadd.s32 %s178, 1
      %p182 = scmp.eq.s32.totalorder %s27, 3
      %p183 = scmp.ne.s32.totalorder %s178, %s180
      %p184 = scmp.eq.s32.totalorder %s27, 0
      %p185 = por %p183, %p184
      %p186 = scmp.ne.s32.totalorder %s178, %s180
      %p187 = scmp.eq.s32.totalorder %s32, 3
      %p188 = por %p186, %p187
      %p189 = scmp.ne.s32.totalorder %s180, %s181
      %p190 = scmp.eq.s32.totalorder %s32, 0
      %p191 = por %p189, %p190
      %p192 = scmp.ne.s32.totalorder %s180, %s181
      %p193 = scmp.eq.s32.totalorder %s33, 3
      %p194 = por %p192, %p193
      %p196 = scmp.ne.s32.totalorder %s181, %s195
      %p197 = scmp.eq.s32.totalorder %s33, 0
      %p198 = por %p196, %p197
      %s200 = sadd.s32 %s199, 1
      %p203 = scmp.eq.s32.totalorder %s27, 3
      %p204 = scmp.ne.s32.totalorder %s199, %s201
      %p205 = scmp.eq.s32.totalorder %s27, 0
      %p206 = por %p204, %p205
      %p207 = scmp.ne.s32.totalorder %s199, %s201
      %p208 = scmp.eq.s32.totalorder %s32, 3
      %p209 = por %p207, %p208
      %p210 = scmp.ne.s32.totalorder %s201, %s202
      %p211 = scmp.eq.s32.totalorder %s32, 0
      %p212 = por %p210, %p211
      %p213 = scmp.ne.s32.totalorder %s201, %s202
      %p214 = scmp.eq.s32.totalorder %s33, 3
      %p215 = por %p213, %p214
      %p217 = scmp.ne.s32.totalorder %s202, %s216
      %p218 = scmp.eq.s32.totalorder %s33, 0
      %p219 = por %p217, %p218
      %s221 = sadd.s32 %s220, 1
      %p224 = scmp.eq.s32.totalorder %s27, 3
      %p225 = scmp.ne.s32.totalorder %s220, %s222
      %p226 = scmp.eq.s32.totalorder %s27, 0
      %p227 = por %p225, %p226
      %p228 = scmp.ne.s32.totalorder %s220, %s222
      %p229 = scmp.eq.s32.totalorder %s32, 3
      %p230 = por %p228, %p229
      %p231 = scmp.ne.s32.totalorder %s222, %s223
      %p232 = scmp.eq.s32.totalorder %s32, 0
      %p233 = por %p231, %p232
      %p234 = scmp.ne.s32.totalorder %s222, %s223
      %p235 = scmp.eq.s32.totalorder %s33, 3
      %p236 = por %p234, %p235
      %p238 = scmp.ne.s32.totalorder %s223, %s237
      %p239 = scmp.eq.s32.totalorder %s33, 0
      %p240 = por %p238, %p239
      %s242 = sadd.s32 %s241, 1
      %p245 = scmp.eq.s32.totalorder %s27, 3
      %p246 = scmp.ne.s32.totalorder %s241, %s243
      %p247 = scmp.eq.s32.totalorder %s27, 0
      %p248 = por %p246, %p247
      %p249 = scmp.ne.s32.totalorder %s241, %s243
      %p250 = scmp.eq.s32.totalorder %s32, 3
      %p251 = por %p249, %p250
      %p252 = scmp.ne.s32.totalorder %s243, %s244
      %p253 = scmp.eq.s32.totalorder %s32, 0
      %p254 = por %p252, %p253
      %p255 = scmp.ne.s32.totalorder %s243, %s244
      %p256 = scmp.eq.s32.totalorder %s33, 3
      %p257 = por %p255, %p256
      %p259 = scmp.ne.s32.totalorder %s244, %s258
      %p260 = scmp.eq.s32.totalorder %s33, 0
      %p261 = por %p259, %p260
      %s263 = sadd.s32 %s262, 1
      %p266 = scmp.eq.s32.totalorder %s27, 3
      %p267 = scmp.ne.s32.totalorder %s262, %s264
      %p268 = scmp.eq.s32.totalorder %s27, 0
      %p269 = por %p267, %p268
      %p270 = scmp.ne.s32.totalorder %s262, %s264
      %p271 = scmp.eq.s32.totalorder %s32, 3
      %p272 = por %p270, %p271
      %p273 = scmp.ne.s32.totalorder %s264, %s265
      %p274 = scmp.eq.s32.totalorder %s32, 0
      %p275 = por %p273, %p274
      %p276 = scmp.ne.s32.totalorder %s264, %s265
      %p277 = scmp.eq.s32.totalorder %s33, 3
      %p278 = por %p276, %p277
      %p280 = scmp.ne.s32.totalorder %s265, %s279
      %p281 = scmp.eq.s32.totalorder %s33, 0
      %p282 = por %p280, %p281
      %s284 = sadd.s32 %s283, 1
      %p287 = scmp.eq.s32.totalorder %s27, 3
      %p288 = scmp.ne.s32.totalorder %s283, %s285
      %p289 = scmp.eq.s32.totalorder %s27, 0
      %p290 = por %p288, %p289
      %p291 = scmp.ne.s32.totalorder %s283, %s285
      %p292 = scmp.eq.s32.totalorder %s32, 3
      %p293 = por %p291, %p292
      %p294 = scmp.ne.s32.totalorder %s285, %s286
      %p295 = scmp.eq.s32.totalorder %s32, 0
      %p296 = por %p294, %p295
      %p297 = scmp.ne.s32.totalorder %s285, %s286
      %p298 = scmp.eq.s32.totalorder %s33, 3
      %p299 = por %p297, %p298
      %p301 = scmp.ne.s32.totalorder %s286, %s300
      %p302 = scmp.eq.s32.totalorder %s33, 0
      %p303 = por %p301, %p302
      %s305 = sadd.s32 %s304, 1
      %p308 = scmp.eq.s32.totalorder %s27, 3
      %p309 = scmp.ne.s32.totalorder %s304, %s306
      %p310 = scmp.eq.s32.totalorder %s27, 0
      %p311 = por %p309, %p310
      %p312 = scmp.ne.s32.totalorder %s304, %s306
      %p313 = scmp.eq.s32.totalorder %s32, 3
      %p314 = por %p312, %p313
      %p315 = scmp.ne.s32.totalorder %s306, %s307
      %p316 = scmp.eq.s32.totalorder %s32, 0
      %p317 = por %p315, %p316
      %p318 = scmp.ne.s32.totalorder %s306, %s307
      %p319 = scmp.eq.s32.totalorder %s33, 3
      %p320 = por %p318, %p319
      %p322 = scmp.ne.s32.totalorder %s307, %s321
      %p323 = scmp.eq.s32.totalorder %s33, 0
      %p324 = por %p322, %p323
      %s326 = sadd.s32 %s325, 1
      %p329 = scmp.eq.s32.totalorder %s27, 3
      %p330 = scmp.ne.s32.totalorder %s325, %s327
      %p331 = scmp.eq.s32.totalorder %s27, 0
      %p332 = por %p330, %p331
      %p333 = scmp.ne.s32.totalorder %s325, %s327
      %p334 = scmp.eq.s32.totalorder %s32, 3
      %p335 = por %p333, %p334
      %p336 = scmp.ne.s32.totalorder %s327, %s328
      %p337 = scmp.eq.s32.totalorder %s32, 0
      %p338 = por %p336, %p337
      %p339 = scmp.ne.s32.totalorder %s327, %s328
      %p340 = scmp.eq.s32.totalorder %s33, 3
      %p341 = por %p339, %p340
      %p343 = scmp.ne.s32.totalorder %s328, %s342
      %p344 = scmp.eq.s32.totalorder %s33, 0
      %p345 = por %p343, %p344
      %s347 = sadd.s32 %s346, 1
      %p350 = scmp.eq.s32.totalorder %s27, 3
      %p351 = scmp.ne.s32.totalorder %s346, %s348
      %p352 = scmp.eq.s32.totalorder %s27, 0
      %p353 = por %p351, %p352
      %p354 = scmp.ne.s32.totalorder %s346, %s348
      %p355 = scmp.eq.s32.totalorder %s32, 3
      %p356 = por %p354, %p355
      %p357 = scmp.ne.s32.totalorder %s348, %s349
      %p358 = scmp.eq.s32.totalorder %s32, 0
      %p359 = por %p357, %p358
      %p360 = scmp.ne.s32.totalorder %s348, %s349
      %p361 = scmp.eq.s32.totalorder %s33, 3
      %p362 = por %p360, %p361
      %p364 = scmp.ne.s32.totalorder %s349, %s363
      %p365 = scmp.eq.s32.totalorder %s33, 0
      %p366 = por %p364, %p365
      %s367 = ssub.s32 %s34, %s46
      %s368 = ssub.s32 %s35, %s42
      %s369 = sor.u32 %s367, %s368
      %p370 = scmp.eq.s32.totalorder %s369, 0
      %s372 = sadd.s32 %s371, 1
      %s373 = scalar_select %p370, %s371, %s372
      %p376 = pneg %p370
      %p377 = scmp.eq.s32.totalorder %s27, 3
      %p378 = por %p376, %p377
      %p379 = scmp.ne.s32.totalorder %s371, %s374
      %p380 = scmp.eq.s32.totalorder %s27, 0
      %p381 = por %p379, %p380
      %p382 = scmp.ne.s32.totalorder %s371, %s374
      %p383 = scmp.eq.s32.totalorder %s32, 3
      %p384 = por %p382, %p383
      %p385 = scmp.ne.s32.totalorder %s374, %s375
      %p386 = scmp.eq.s32.totalorder %s32, 0
      %p387 = por %p385, %p386
      %p388 = scmp.ne.s32.totalorder %s374, %s375
      %p389 = scmp.eq.s32.totalorder %s33, 3
      %p390 = por %p388, %p389
      %p392 = scmp.ne.s32.totalorder %s375, %s391
      %p393 = scmp.eq.s32.totalorder %s33, 0
      %p394 = por %p392, %p393
      %p395 = scmp.le.s32.totalorder 1, %s27
      %p396 = scmp.lt.s32.totalorder %s27, 5
      %p397 = pnand %p395, %p396
      %p398 = pneg %p397
      // Predicated region
      $region9: #{tpu_custom_call.1} parent=5 // pred_check
        _
      $region10: #{tpu_custom_call.1} parent=5 // pred_check_branch
        %400 = sbr.rel (%p397) target = $region12
      $region11: #{tpu_custom_call.1} parent=5 // pred_region
        %s401 = ssub.s32 %s27, 1
        // Predicated region
        $region13: #{tpu_custom_call.1} parent=11 // pred_check
          %p402 = pneg %p86
        $region14: #{tpu_custom_call.1} parent=11 // pred_check_branch
          %404 = sbr.rel (%p402) target = $region16
        $region15: #{tpu_custom_call.1} parent=11 // pred_region
          %406 = vsyncadd [#allocation7], 0
          %s408 = sshll.u32 %s1, 4
          %s409 = int_to_ptr.hbm [resolvable:$true] %s408
          %s410 = sshll.u32 [#allocation6], 4
          %s411 = int_to_ptr.vmem [resolvable:$true] %s410
          %413 = dma.hbm_to_vmem [thread:$0]  %s409, 16, %s411, [#allocation7]
        $region16: #{tpu_custom_call.1} parent=11 // pred_fallthru
          _
        // Predicated region
        $region17: #{tpu_custom_call.1} parent=11 // pred_check
          %p414 = pneg %p107
        $region18: #{tpu_custom_call.1} parent=11 // pred_check_branch
          %416 = sbr.rel (%p414) target = $region20
        $region19: #{tpu_custom_call.1} parent=11 // pred_region
          _
        $region20: #{tpu_custom_call.1} parent=11 // pred_fallthru
          _
        // Predicated region
        $region21: #{tpu_custom_call.1} parent=11 // pred_check
          %p417 = pneg %p128
        $region22: #{tpu_custom_call.1} parent=11 // pred_check_branch
          %419 = sbr.rel (%p417) target = $region24
        $region23: #{tpu_custom_call.1} parent=11 // pred_region
          _
        $region24: #{tpu_custom_call.1} parent=11 // pred_fallthru
          _
        // Predicated region
        $region25: #{tpu_custom_call.1} parent=11 // pred_check
          %p420 = pneg %p149
        $region26: #{tpu_custom_call.1} parent=11 // pred_check_branch
          %422 = sbr.rel (%p420) target = $region28
        $region27: #{tpu_custom_call.1} parent=11 // pred_region
          _
        $region28: #{tpu_custom_call.1} parent=11 // pred_fallthru
          _
        // Predicated region
        $region29: #{tpu_custom_call.1} parent=11 // pred_check
          %p423 = pneg %p170
        $region30: #{tpu_custom_call.1} parent=11 // pred_check_branch
          %425 = sbr.rel (%p423) target = $region32
        $region31: #{tpu_custom_call.1} parent=11 // pred_region
          %427 = vsyncadd [#allocation10], 0
          %s428 = sshll.u32 %s5, 4
          %s429 = int_to_ptr.hbm [resolvable:$true] %s428
          %s430 = sshll.u32 [#allocation9], 4
          %s431 = int_to_ptr.vmem [resolvable:$true] %s430
          %436 = dma.hbm_to_vmem [thread:$0]  %s429, 256, %s431, [#allocation10], 64, 64, 4
        $region32: #{tpu_custom_call.1} parent=11 // pred_fallthru
          _
        // Predicated region
        $region33: #{tpu_custom_call.1} parent=11 // pred_check
          %p437 = pneg %p191
        $region34: #{tpu_custom_call.1} parent=11 // pred_check_branch
          %439 = sbr.rel (%p437) target = $region36
        $region35: #{tpu_custom_call.1} parent=11 // pred_region
          _
        $region36: #{tpu_custom_call.1} parent=11 // pred_fallthru
          _
        // Predicated region
        $region37: #{tpu_custom_call.1} parent=11 // pred_check
          %p440 = pneg %p212
        $region38: #{tpu_custom_call.1} parent=11 // pred_check_branch
          %442 = sbr.rel (%p440) target = $region40
        $region39: #{tpu_custom_call.1} parent=11 // pred_region
          %444 = vsyncadd [#allocation10], 0
          %s445 = sshll.u32 %s7, 4
          %s446 = int_to_ptr.hbm [resolvable:$true] %s445
          %s447 = sshll.u32 [#allocation11], 4
          %s448 = int_to_ptr.vmem [resolvable:$true] %s447
          %453 = dma.hbm_to_vmem [thread:$0]  %s446, 256, %s448, [#allocation10], 64, 64, 4
        $region40: #{tpu_custom_call.1} parent=11 // pred_fallthru
          _
        // Predicated region
        $region41: #{tpu_custom_call.1} parent=11 // pred_check
          %p454 = pneg %p233
        $region42: #{tpu_custom_call.1} parent=11 // pred_check_branch
          %456 = sbr.rel (%p454) target = $region44
        $region43: #{tpu_custom_call.1} parent=11 // pred_region
          _
        $region44: #{tpu_custom_call.1} parent=11 // pred_fallthru
          _
        // Predicated region
        $region45: #{tpu_custom_call.1} parent=11 // pred_check
          %p457 = pneg %p254
        $region46: #{tpu_custom_call.1} parent=11 // pred_check_branch
          %459 = sbr.rel (%p457) target = $region48
        $region47: #{tpu_custom_call.1} parent=11 // pred_region
          _
        $region48: #{tpu_custom_call.1} parent=11 // pred_fallthru
          _
        // Predicated region
        $region49: #{tpu_custom_call.1} parent=11 // pred_check
          %p460 = pneg %p275
        $region50: #{tpu_custom_call.1} parent=11 // pred_check_branch
          %462 = sbr.rel (%p460) target = $region52
        $region51: #{tpu_custom_call.1} parent=11 // pred_region
          _
        $region52: #{tpu_custom_call.1} parent=11 // pred_fallthru
          _
        // Predicated region
        $region53: #{tpu_custom_call.1} parent=11 // pred_check
          %p463 = pneg %p296
        $region54: #{tpu_custom_call.1} parent=11 // pred_check_branch
          %465 = sbr.rel (%p463) target = $region56
        $region55: #{tpu_custom_call.1} parent=11 // pred_region
          %467 = vsyncadd [#allocation13], 0
          %s468 = sshll.u32 %s11, 4
          %s469 = int_to_ptr.hbm [resolvable:$true] %s468
          %s470 = sshll.u32 [#allocation12], 4
          %s471 = int_to_ptr.vmem [resolvable:$true] %s470
          %476 = dma.hbm_to_vmem [thread:$0]  %s469, 256, %s471, [#allocation13], 64, 64, 4
        $region56: #{tpu_custom_call.1} parent=11 // pred_fallthru
          _
        // Predicated region
        $region57: #{tpu_custom_call.1} parent=11 // pred_check
          %p477 = pneg %p317
        $region58: #{tpu_custom_call.1} parent=11 // pred_check_branch
          %479 = sbr.rel (%p477) target = $region60
        $region59: #{tpu_custom_call.1} parent=11 // pred_region
          _
        $region60: #{tpu_custom_call.1} parent=11 // pred_fallthru
          _
        // Predicated region
        $region61: #{tpu_custom_call.1} parent=11 // pred_check
          %p480 = pneg %p338
        $region62: #{tpu_custom_call.1} parent=11 // pred_check_branch
          %482 = sbr.rel (%p480) target = $region64
        $region63: #{tpu_custom_call.1} parent=11 // pred_region
          _
        $region64: #{tpu_custom_call.1} parent=11 // pred_fallthru
          _
        // Predicated region
        $region65: #{tpu_custom_call.1} parent=11 // pred_check
          %p483 = pneg %p359
        $region66: #{tpu_custom_call.1} parent=11 // pred_check_branch
          %485 = sbr.rel (%p483) target = $region68
        $region67: #{tpu_custom_call.1} parent=11 // pred_region
          _
        $region68: #{tpu_custom_call.1} parent=11 // pred_fallthru
          _
      $region12: #{tpu_custom_call.1} parent=5 // pred_fallthru
        _
      %p486 = scmp.lt.s32.totalorder %s27, 4
      // Predicated region
      $region69: #{tpu_custom_call.1} parent=5 // pred_check
        %p487 = pneg %p486
      $region70: #{tpu_custom_call.1} parent=5 // pred_check_branch
        %489 = sbr.rel (%p487) target = $region72
      $region71: #{tpu_custom_call.1} parent=5 // pred_region
        // Predicated region
        $region73: #{tpu_custom_call.1} parent=71 // pred_check
          %p490 = pneg %p59
        $region74: #{tpu_custom_call.1} parent=71 // pred_check_branch
          %492 = sbr.rel (%p490) target = $region76
        $region75: #{tpu_custom_call.1} parent=71 // pred_region
          %p493 = scmp.lt.s32.totalorder %s34, 1
          %s494 = scalar_select %p493, %s34, 1
          %s495 = smul.addr %s494, 2
          %s496 = smul.addr %s495, 8
          %s497 = scalar_lea.vmem %s0, %s496
        $region76: #{tpu_custom_call.1} parent=71 // pred_fallthru
          _
      $region72: #{tpu_custom_call.1} parent=5 // pred_fallthru
        _
      %p498 = scmp.le.s32.totalorder 1, %s27
      %p499 = scmp.lt.s32.totalorder %s27, 5
      %p500 = pnand %p498, %p499
      %p501 = pneg %p500
      // Predicated region
      $region77: #{tpu_custom_call.1} parent=5 // pred_check
        _
      $region78: #{tpu_custom_call.1} parent=5 // pred_check_branch
        %503 = sbr.rel (%p500) target = $region80
      $region79: #{tpu_custom_call.1} parent=5 // pred_region
        %s504 = ssub.s32 %s27, 1
        // Predicated region
        $region81: #{tpu_custom_call.1} parent=79 // pred_check
          %p505 = pneg %p86
        $region82: #{tpu_custom_call.1} parent=79 // pred_check_branch
          %507 = sbr.rel (%p505) target = $region84
        $region83: #{tpu_custom_call.1} parent=79 // pred_region
          %509 = dma.done [#allocation7], 16
        $region84: #{tpu_custom_call.1} parent=79 // pred_fallthru
          _
        // Predicated region
        $region85: #{tpu_custom_call.1} parent=79 // pred_check
          %p510 = pneg %p170
        $region86: #{tpu_custom_call.1} parent=79 // pred_check_branch
          %512 = sbr.rel (%p510) target = $region88
        $region87: #{tpu_custom_call.1} parent=79 // pred_region
          %514 = dma.done [#allocation10], 256
        $region88: #{tpu_custom_call.1} parent=79 // pred_fallthru
          _
        // Predicated region
        $region89: #{tpu_custom_call.1} parent=79 // pred_check
          %p515 = pneg %p212
        $region90: #{tpu_custom_call.1} parent=79 // pred_check_branch
          %517 = sbr.rel (%p515) target = $region92
        $region91: #{tpu_custom_call.1} parent=79 // pred_region
          %519 = dma.done [#allocation10], 256
        $region92: #{tpu_custom_call.1} parent=79 // pred_fallthru
          _
        // Predicated region
        $region93: #{tpu_custom_call.1} parent=79 // pred_check
          %p520 = pneg %p296
        $region94: #{tpu_custom_call.1} parent=79 // pred_check_branch
          %522 = sbr.rel (%p520) target = $region96
        $region95: #{tpu_custom_call.1} parent=79 // pred_region
          %524 = dma.done [#allocation13], 256
        $region96: #{tpu_custom_call.1} parent=79 // pred_fallthru
          _
        %p525 = scmp.lt.s32.totalorder %s36, 1
        %s526 = scalar_select %p525, %s36, 1
        %s527 = smul.addr %s526, 2
        %s528 = smul.addr %s527, 8
        %s529 = scalar_lea.vmem %s0, %s528
        %p530 = pneg %p65
        %p531 = pneg %p62
        %p532 = pneg %p86
        %p533 = pneg %p83
        %p534 = pneg %p107
        %p535 = pneg %p104
        %p536 = pneg %p128
        %p537 = pneg %p125
        %p538 = pneg %p149
        %p539 = pneg %p146
        %p540 = pneg %p170
        %p541 = pneg %p167
        %p542 = pneg %p191
        %p543 = pneg %p188
        %p544 = pneg %p212
        %p545 = pneg %p209
        %p546 = pneg %p233
        %p547 = pneg %p230
        %p548 = pneg %p254
        %p549 = pneg %p251
        %p550 = pneg %p275
        %p551 = pneg %p272
        %p552 = pneg %p296
        %p553 = pneg %p293
        %p554 = pneg %p317
        %p555 = pneg %p314
        %p556 = pneg %p338
        %p557 = pneg %p335
        %p558 = pneg %p359
        %p559 = pneg %p356
        %p560 = pneg %p387
        %p561 = pneg %p384
        %s562 = sand.u32 %s374, 1
        %s563 = scalar_lea.sflag [#allocation8], %s562
        %s564 = sand.u32 %s374, 1
        %s565 = smul.addr %s564, 8
        %s566 = scalar_lea.vmem [#allocation14], %s565
        %p567 = scmp.lt.s32.totalorder %s36, 1
        %s568 = scalar_select %p567, %s36, 1
        %s569 = smul.addr %s568, 2
        %s570 = smul.addr %s569, 8
        %s571 = scalar_lea.vmem %s0, %s570
        %v573 = vld [vmem:[#allocation6] sm:$0x1]
        %v574 = vld [vmem:[%s2] sm:$0x1]
        %p575 = scmp.eq.s32.totalorder %s37, 0
        // Predicated region
        $region97: #{tpu_custom_call.1} parent=79 // pred_check
          %p576 = pneg %p575
        $region98: #{tpu_custom_call.1} parent=79 // pred_check_branch
          %578 = sbr.rel (%p576) target = $region100
        $region99: #{tpu_custom_call.1} parent=79 // pred_region
          %v579 = vld [vmem:[%s571] sm:$0xff]
          %v580 = vld [vmem:[%s571 + $0x8] sm:$0xff]
          %vm581 = vcmask 261120
          %v582 = vsel %vm581, %v579, 0.0
          %583 = vadd.xlane.f32.xlu0 %v582
          %v584 = vpop.xlane.xlu0 %583
          %v585 = vsel %vm581, %v580, 0.0
          %586 = vadd.xlane.f32.xlu0 %v585
          %v587 = vpop.xlane.xlu0 %586
          %v588 = vrcp.pop 32.0
          %v589 = vmul.f32 32.0, %v588
          %v590 = vsub.f32 1.0, %v589
          %v591 = vmul.f32 %v588, %v590
          %v592 = vadd.f32 %v588, %v591
          %vm593 = vweird.f32 %v588
          %v594 = vsel %vm593, %v588, %v592
          %v595 = vmul.f32 %v584, %v594
          %v596 = vmul.f32 %v587, %v594
          %v597 = vsub.f32 %v579, %v595
          %v598 = vsub.f32 %v580, %v596
          %v599 = vmul.f32 %v597, %v597
          %v600 = vmul.f32 %v598, %v598
          %v601 = vsel %vm581, %v599, 0.0
          %602 = vadd.xlane.f32.xlu0 %v601
          %v603 = vpop.xlane.xlu0 %602
          %v604 = vsel %vm581, %v600, 0.0
          %605 = vadd.xlane.f32.xlu0 %v604
          %v606 = vpop.xlane.xlu0 %605
          %v607 = vmul.f32 %v603, 0.032258064
          %v608 = vmul.f32 %v606, 0.032258064
          %v609 = vrsqrt.pop %v607
          %v610 = vmul.f32 %v609, %v607
          %v611 = vmul.f32 %v610, %v609
          %v612 = vmul.f32 0.5, %v611
          %v613 = vsub.f32 1.5, %v612
          %v614 = vmul.f32 %v609, %v613
          %v615 = vmul.f32 %v607, %v614
          %vm616 = vcmp.eq.f32.partialorder %v607, inf
          %v617 = vsel %vm616, %v607, %v615
          %vm618 = vcmp.eq.f32.partialorder %v607, 0.0
          %v619 = vand.u32 %v607, 2147483648
          %v620 = vsel %vm618, %v619, %v617
          %v621 = vrsqrt.pop %v608
          %v622 = vmul.f32 %v621, %v608
          %v623 = vmul.f32 %v622, %v621
          %v624 = vmul.f32 0.5, %v623
          %v625 = vsub.f32 1.5, %v624
          %v626 = vmul.f32 %v621, %v625
          %v627 = vmul.f32 %v608, %v626
          %vm628 = vcmp.eq.f32.partialorder %v608, inf
          %v629 = vsel %vm628, %v608, %v627
          %vm630 = vcmp.eq.f32.partialorder %v608, 0.0
          %v631 = vand.u32 %v608, 2147483648
          %v632 = vsel %vm630, %v631, %v629
          %v633 = vadd.f32 %v620, 1e-06
          %v634 = vadd.f32 %v632, 1e-06
          %v635 = vrcp.pop %v633
          %v636 = vmul.f32 %v633, %v635
          %v637 = vsub.f32 1.0, %v636
          %v638 = vmul.f32 %v635, %v637
          %v639 = vadd.f32 %v635, %v638
          %vm640 = vweird.f32 %v633
          %vm641 = vweird.f32 %v635
          %vm642 = vmor %vm640, %vm641
          %v643 = vsel %vm642, %v635, %v639
          %v644 = vand.u32 2147483647, %v633
          %vm645 = vcmp.eq.f32.partialorder %v644, 8.507059e+37
          %v646 = vand.u32 %v633, 2147483648
          %v647 = vor.u32 1.1754944e-38, %v646
          %v648 = vsel %vm645, %v647, %v643
          %v649 = vmul.f32 %v597, %v648
          %v650 = vrcp.pop %v634
          %v651 = vmul.f32 %v634, %v650
          %v652 = vsub.f32 1.0, %v651
          %v653 = vmul.f32 %v650, %v652
          %v654 = vadd.f32 %v650, %v653
          %vm655 = vweird.f32 %v634
          %vm656 = vweird.f32 %v650
          %vm657 = vmor %vm655, %vm656
          %v658 = vsel %vm657, %v650, %v654
          %v659 = vand.u32 2147483647, %v634
          %vm660 = vcmp.eq.f32.partialorder %v659, 8.507059e+37
          %v661 = vand.u32 %v634, 2147483648
          %v662 = vor.u32 1.1754944e-38, %v661
          %v663 = vsel %vm660, %v662, %v658
          %v664 = vmul.f32 %v598, %v663
          %v666 = vperm.slane %v573, 0
          %v668 = vmul.f32 %v666, %v649
          %v669 = vmul.f32 %v666, %v664
          %v671 = vperm.slane %v574, 0
          %v673 = vadd.f32 %v668, %v671
          %v674 = vadd.f32 %v669, %v671
          %v675 = vpack.c.bf16 %v674, %v673
          %v676 = vld [vmem:[#allocation9] sm:$0xf]
          %v677 = vld [vmem:[#allocation9 + $0x4] sm:$0xf]
          %v678 = vld [vmem:[#allocation9 + $0x8] sm:$0xf]
          %v679 = vld [vmem:[#allocation9 + $0xc] sm:$0xf]
          %v680 = vld [vmem:[%s6] sm:$0x1]
          %v682 = vperm.slane %v680, 0
          %v688 = vunpack.c.l.b16 %v676
          %v689 = vunpack.c.l.b16 %v677
          %v690 = vunpack.c.l.b16 %v678
          %v691 = vunpack.c.l.b16 %v679
          %v692 = vpack.c.b16 %v689, %v688
          %v693 = vpack.c.b16 %v691, %v690
          %v697 = vsel %vm581, %v675, 0
          %699 = vmatpush.bf16.msra.mxu0 0
          %700 = vmatpush.bf16.msra.mxu0 0
          %701 = vmatpush.bf16.msra.mxu0 0
          %702 = vmatpush.bf16.msra.mxu0 0
          %703 = vmatpush.bf16.msra.mxu0 0
          %704 = vmatpush.bf16.msra.mxu0 0
          %705 = vmatpush.bf16.msra.mxu0 %v693
          %706 = vmatpush.bf16.msra.mxu0 %v692
          %707 = vmatmul.bf16.gmra.mxu0 %v697
          %v708 = vpop.f32.mrf.mxu0
          %v709 = vadd.f32 %v682, %v708
          %v710 = vpop.f32.mrf.mxu0
          %v711 = vadd.f32 %v682, %v710
          %712 = vdwg.mxu0
          %v713 = vpack.c.bf16 %v709, %v709
          %v714 = vpack.c.bf16 %v711, %v711
          %vm715 = vcmask 60416
          %716 = vst.msk [vmem:[#allocation2] sm:$0xf] %vm715, %v713
          %717 = vst.msk [vmem:[#allocation2 + $0x4] sm:$0xf] %vm715, %v714
          %720 = vrot.lane.b32.xlu0 %v713, 96
          %v721 = vpop.permute.xlu0 %720
          %722 = vrot.lane.b32.xlu0 %v714, 96
          %v723 = vpop.permute.xlu0 %722
          %726 = vst.msk [vmem:[#allocation3] sm:$0xf] %vm715, %v721
          %727 = vst.msk [vmem:[#allocation3 + $0x4] sm:$0xf] %vm715, %v723
          %728 = vrot.lane.b32.xlu0 %v713, 120
          %v729 = vpop.permute.xlu0 %728
          %730 = vrot.lane.b32.xlu0 %v714, 120
          %v731 = vpop.permute.xlu0 %730
          %s734 = scalar_lea.vmem [#allocation2], 8
          %735 = vst.msk [vmem:[%s734] sm:$0xf] %vm715, %v729
          %736 = vst.msk [vmem:[%s734 + $0x4] sm:$0xf] %vm715, %v731
          %737 = vrot.lane.b32.xlu0 %v713, 88
          %v738 = vpop.permute.xlu0 %737
          %739 = vrot.lane.b32.xlu0 %v714, 88
          %v740 = vpop.permute.xlu0 %739
          %s743 = scalar_lea.vmem [#allocation3], 8
          %744 = vst.msk [vmem:[%s743] sm:$0xf] %vm715, %v738
          %745 = vst.msk [vmem:[%s743 + $0x4] sm:$0xf] %vm715, %v740
          %746 = vrot.lane.b32.xlu0 %v713, 112
          %v747 = vpop.permute.xlu0 %746
          %748 = vrot.lane.b32.xlu0 %v714, 112
          %v749 = vpop.permute.xlu0 %748
          %s752 = scalar_lea.vmem [#allocation2], 16
          %753 = vst.msk [vmem:[%s752] sm:$0xf] %vm715, %v747
          %754 = vst.msk [vmem:[%s752 + $0x4] sm:$0xf] %vm715, %v749
          %755 = vrot.lane.b32.xlu0 %v713, 80
          %v756 = vpop.permute.xlu0 %755
          %757 = vrot.lane.b32.xlu0 %v714, 80
          %v758 = vpop.permute.xlu0 %757
          %s761 = scalar_lea.vmem [#allocation3], 16
          %762 = vst.msk [vmem:[%s761] sm:$0xf] %vm715, %v756
          %763 = vst.msk [vmem:[%s761 + $0x4] sm:$0xf] %vm715, %v758
          %764 = vrot.lane.b32.xlu0 %v713, 104
          %v765 = vpop.permute.xlu0 %764
          %766 = vrot.lane.b32.xlu0 %v714, 104
          %v767 = vpop.permute.xlu0 %766
          %s770 = scalar_lea.vmem [#allocation2], 24
          %771 = vst.msk [vmem:[%s770] sm:$0xf] %vm715, %v765
          %772 = vst.msk [vmem:[%s770 + $0x4] sm:$0xf] %vm715, %v767
          %773 = vrot.lane.b32.xlu0 %v713, 72
          %v774 = vpop.permute.xlu0 %773
          %775 = vrot.lane.b32.xlu0 %v714, 72
          %v776 = vpop.permute.xlu0 %775
          %s779 = scalar_lea.vmem [#allocation3], 24
          %780 = vst.msk [vmem:[%s779] sm:$0xf] %vm715, %v774
          %781 = vst.msk [vmem:[%s779 + $0x4] sm:$0xf] %vm715, %v776
        $region100: #{tpu_custom_call.1} parent=79 // pred_fallthru
          _
        %s782 = smul.u32 %s37, 8
        %s783 = scalar_lea.vmem %s571, %s782
        %v784 = vld [vmem:[%s783] sm:$0xff]
        %vm785 = vcmask 261120
        %v786 = vsel %vm785, %v784, 0.0
        %787 = vadd.xlane.f32.xlu0 %v786
        %v788 = vpop.xlane.xlu0 %787
        %v789 = vrcp.pop 32.0
        %v790 = vmul.f32 32.0, %v789
        %v791 = vsub.f32 1.0, %v790
        %v792 = vmul.f32 %v789, %v791
        %v793 = vadd.f32 %v789, %v792
        %vm794 = vweird.f32 %v789
        %v795 = vsel %vm794, %v789, %v793
        %v796 = vmul.f32 %v788, %v795
        %v797 = vsub.f32 %v784, %v796
        %v798 = vmul.f32 %v797, %v797
        %v799 = vsel %vm785, %v798, 0.0
        %800 = vadd.xlane.f32.xlu0 %v799
        %v801 = vpop.xlane.xlu0 %800
        %v802 = vmul.f32 %v801, 0.032258064
        %v803 = vrsqrt.pop %v802
        %v804 = vmul.f32 %v803, %v802
        %v805 = vmul.f32 %v804, %v803
        %v806 = vmul.f32 0.5, %v805
        %v807 = vsub.f32 1.5, %v806
        %v808 = vmul.f32 %v803, %v807
        %v809 = vmul.f32 %v802, %v808
        %vm810 = vcmp.eq.f32.partialorder %v802, inf
        %v811 = vsel %vm810, %v802, %v809
        %vm812 = vcmp.eq.f32.partialorder %v802, 0.0
        %v813 = vand.u32 %v802, 2147483648
        %v814 = vsel %vm812, %v813, %v811
        %v815 = vadd.f32 %v814, 1e-06
        %v816 = vrcp.pop %v815
        %v817 = vmul.f32 %v815, %v816
        %v818 = vsub.f32 1.0, %v817
        %v819 = vmul.f32 %v816, %v818
        %v820 = vadd.f32 %v816, %v819
        %vm821 = vweird.f32 %v815
        %vm822 = vweird.f32 %v816
        %vm823 = vmor %vm821, %vm822
        %v824 = vsel %vm823, %v816, %v820
        %v825 = vand.u32 2147483647, %v815
        %vm826 = vcmp.eq.f32.partialorder %v825, 8.507059e+37
        %v827 = vand.u32 %v815, 2147483648
        %v828 = vor.u32 1.1754944e-38, %v827
        %v829 = vsel %vm826, %v828, %v824
        %v830 = vmul.f32 %v797, %v829
        %v832 = vperm.slane %v573, 0
        %v834 = vmul.f32 %v832, %v830
        %v836 = vperm.slane %v574, 0
        %v838 = vadd.f32 %v834, %v836
        %v839 = vpack.c.bf16 %v838, %v838
        %v840 = vld [vmem:[%s3] sm:$0xf]
        %v841 = vld [vmem:[%s3 + $0x4] sm:$0xf]
        %v842 = vld [vmem:[%s3 + $0x8] sm:$0xf]
        %v843 = vld [vmem:[%s3 + $0xc] sm:$0xf]
        %v844 = vld [vmem:[%s4] sm:$0x1]
        %v846 = vperm.slane %v844, 0
        %v852 = vunpack.c.l.b16 %v840
        %v853 = vunpack.c.l.b16 %v841
        %v854 = vunpack.c.l.b16 %v842
        %v855 = vunpack.c.l.b16 %v843
        %v856 = vpack.c.b16 %v853, %v852
        %v857 = vpack.c.b16 %v855, %v854
        %v861 = vsel %vm785, %v839, 0
        %863 = vmatpush.bf16.msra.mxu0 0
        %864 = vmatpush.bf16.msra.mxu0 0
        %865 = vmatpush.bf16.msra.mxu0 0
        %866 = vmatpush.bf16.msra.mxu0 0
        %867 = vmatpush.bf16.msra.mxu0 0
        %868 = vmatpush.bf16.msra.mxu0 0
        %869 = vmatpush.bf16.msra.mxu0 %v857
        %870 = vmatpush.bf16.msra.mxu0 %v856
        %871 = vmatmul.bf16.gmra.mxu0 %v861
        %v872 = vpop.f32.mrf.mxu0
        %v873 = vadd.f32 %v846, %v872
        %v874 = vpop.f32.mrf.mxu0
        %875 = vdwg.mxu0
        %v876 = vpack.c.bf16 %v873, %v873
        %vm877 = vcmask 60416
        %878 = vst.msk [vmem:[#allocation4] sm:$0xf] %vm877, %v876
        %880 = vrot.lane.b32.xlu0 %v876, 120
        %v881 = vpop.permute.xlu0 %880
        %s883 = scalar_lea.vmem [#allocation4], 4
        %884 = vst.msk [vmem:[%s883] sm:$0xf] %vm877, %v881
        %885 = vrot.lane.b32.xlu0 %v876, 112
        %v886 = vpop.permute.xlu0 %885
        %s888 = scalar_lea.vmem [#allocation4], 8
        %889 = vst.msk [vmem:[%s888] sm:$0xf] %vm877, %v886
        %890 = vrot.lane.b32.xlu0 %v876, 104
        %v891 = vpop.permute.xlu0 %890
        %s893 = scalar_lea.vmem [#allocation4], 12
        %894 = vst.msk [vmem:[%s893] sm:$0xf] %vm877, %v891
        %v895 = vld [vmem:[#allocation4] sm:$0xf]
        %v896 = vld [vmem:[#allocation4 + $0x4] sm:$0xf]
        %v897 = vld [vmem:[#allocation4 + $0x8] sm:$0xf]
        %v898 = vld [vmem:[#allocation4 + $0xc] sm:$0xf]
        loop: start=0, step=1, limit=2
        $region101: #{tpu_custom_call.1} parent=79 // loop_pre_header
          _
        $region102: #{tpu_custom_call.1} parent=79 // loop_header
          %s900 = sphi 0, %s904
          %p901 = scmp.ge.s32.totalorder %s900, 2
          %v905 = vphi -inf, %v1021
          %v906 = vphi -inf, %v1022
          %v907 = vphi -inf, %v1023
          %v908 = vphi -inf, %v1024
          %v909 = vphi 0.0, %v1065
          %v910 = vphi 0.0, %v1066
          %v911 = vphi 0.0, %v1067
          %v912 = vphi 0.0, %v1068
          %v913 = vphi 0.0, %v1154
          %v914 = vphi 0.0, %v1155
          %v915 = vphi 0.0, %v1156
          %v916 = vphi 0.0, %v1157
        $region103: #{tpu_custom_call.1} parent=79 // loop_header_branch
          %903 = sbr.rel (%p901) target = $region107
        $region104: #{tpu_custom_call.1} parent=79 // loop_body
          %s917 = smul.u32 %s900, 8
          %s918 = sshra.s32 %s917, 3
          %s919 = sand.u32 %s917, 7
          %s920 = smul.addr %s918, 4
          %s921 = scalar_lea.vmem [#allocation2], %s920
          %v922 = vld [vmem:[%s921] sm:$0xf]
          %v923 = vld [vmem:[%s921 + $0x8] sm:$0xf]
          %v924 = vld [vmem:[%s921 + $0x10] sm:$0xf]
          %v925 = vld [vmem:[%s921 + $0x18] sm:$0xf]
          %s926 = smul.addr %s918, 4
          %s927 = scalar_lea.vmem [#allocation3], %s926
          %v928 = vld [vmem:[%s927] sm:$0xf]
          %v929 = vld [vmem:[%s927 + $0x8] sm:$0xf]
          %v930 = vld [vmem:[%s927 + $0x10] sm:$0xf]
          %v931 = vld [vmem:[%s927 + $0x18] sm:$0xf]
          %vm932 = vcmask 64512
          %v934 = vsel %vm932, %v895, 0
          %v937 = vsel %vm932, %v922, 0
          %939 = vmatpush.bf16.xpose.msra.mxu0 0
          %940 = vmatpush.bf16.xpose.msra.mxu0 0
          %941 = vmatpush.bf16.xpose.msra.mxu0 0
          %942 = vmatpush.bf16.xpose.msra.mxu0 0
          %943 = vmatpush.bf16.xpose.msra.mxu0 0
          %944 = vmatpush.bf16.xpose.msra.mxu0 0
          %945 = vmatpush.bf16.xpose.msra.mxu0 0
          %946 = vmatpush.bf16.xpose.msra.mxu0 %v937
          %947 = vmatmul.bf16.gmra.mxu0 %v934
          %v948 = vpop.f32.mrf.mxu0
          %v949 = vadd.f32 0.0, %v948
          %v950 = vpop.f32.mrf.mxu0
          %951 = vdwg.mxu0
          %v953 = vsel %vm932, %v896, 0
          %v956 = vsel %vm932, %v923, 0
          %958 = vmatpush.bf16.xpose.msra.mxu0 0
          %959 = vmatpush.bf16.xpose.msra.mxu0 0
          %960 = vmatpush.bf16.xpose.msra.mxu0 0
          %961 = vmatpush.bf16.xpose.msra.mxu0 0
          %962 = vmatpush.bf16.xpose.msra.mxu0 0
          %963 = vmatpush.bf16.xpose.msra.mxu0 0
          %964 = vmatpush.bf16.xpose.msra.mxu0 0
          %965 = vmatpush.bf16.xpose.msra.mxu0 %v956
          %966 = vmatmul.bf16.gmra.mxu0 %v953
          %v967 = vpop.f32.mrf.mxu0
          %v968 = vadd.f32 0.0, %v967
          %v969 = vpop.f32.mrf.mxu0
          %970 = vdwg.mxu0
          %v972 = vsel %vm932, %v897, 0
          %v975 = vsel %vm932, %v924, 0
          %977 = vmatpush.bf16.xpose.msra.mxu0 0
          %978 = vmatpush.bf16.xpose.msra.mxu0 0
          %979 = vmatpush.bf16.xpose.msra.mxu0 0
          %980 = vmatpush.bf16.xpose.msra.mxu0 0
          %981 = vmatpush.bf16.xpose.msra.mxu0 0
          %982 = vmatpush.bf16.xpose.msra.mxu0 0
          %983 = vmatpush.bf16.xpose.msra.mxu0 0
          %984 = vmatpush.bf16.xpose.msra.mxu0 %v975
          %985 = vmatmul.bf16.gmra.mxu0 %v972
          %v986 = vpop.f32.mrf.mxu0
          %v987 = vadd.f32 0.0, %v986
          %v988 = vpop.f32.mrf.mxu0
          %989 = vdwg.mxu0
          %v991 = vsel %vm932, %v898, 0
          %v994 = vsel %vm932, %v925, 0
          %996 = vmatpush.bf16.xpose.msra.mxu0 0
          %997 = vmatpush.bf16.xpose.msra.mxu0 0
          %998 = vmatpush.bf16.xpose.msra.mxu0 0
          %999 = vmatpush.bf16.xpose.msra.mxu0 0
          %1000 = vmatpush.bf16.xpose.msra.mxu0 0
          %1001 = vmatpush.bf16.xpose.msra.mxu0 0
          %1002 = vmatpush.bf16.xpose.msra.mxu0 0
          %1003 = vmatpush.bf16.xpose.msra.mxu0 %v994
          %1004 = vmatmul.bf16.gmra.mxu0 %v991
          %v1005 = vpop.f32.mrf.mxu0
          %v1006 = vadd.f32 0.0, %v1005
          %v1007 = vpop.f32.mrf.mxu0
          %1008 = vdwg.mxu0
          %v1009 = vsel %vm932, %v949, -inf
          %1010 = vmax.xlane.f32.xlu0 %v1009
          %v1011 = vpop.xlane.xlu0 %1010
          %v1012 = vsel %vm932, %v968, -inf
          %1013 = vmax.xlane.f32.xlu0 %v1012
          %v1014 = vpop.xlane.xlu0 %1013
          %v1015 = vsel %vm932, %v987, -inf
          %1016 = vmax.xlane.f32.xlu0 %v1015
          %v1017 = vpop.xlane.xlu0 %1016
          %v1018 = vsel %vm932, %v1006, -inf
          %1019 = vmax.xlane.f32.xlu0 %v1018
          %v1020 = vpop.xlane.xlu0 %1019
          %v1021 = vmax.f32 %v905, %v1011
          %v1022 = vmax.f32 %v906, %v1014
          %v1023 = vmax.f32 %v907, %v1017
          %v1024 = vmax.f32 %v908, %v1020
          %v1025 = vsub.f32 %v905, %v1021
          %v1026 = vsub.f32 %v906, %v1022
          %v1027 = vsub.f32 %v907, %v1023
          %v1028 = vsub.f32 %v908, %v1024
          %v1029 = vmul.f32 %v1025, 1.442695
          %v1030 = vpow.pop %v1029
          %v1031 = vmul.f32 %v1026, 1.442695
          %v1032 = vpow.pop %v1031
          %v1033 = vmul.f32 %v1027, 1.442695
          %v1034 = vpow.pop %v1033
          %v1035 = vmul.f32 %v1028, 1.442695
          %v1036 = vpow.pop %v1035
          %v1037 = vsub.f32 %v949, %v1021
          %v1038 = vsub.f32 %v968, %v1022
          %v1039 = vsub.f32 %v987, %v1023
          %v1040 = vsub.f32 %v1006, %v1024
          %v1041 = vmul.f32 %v1037, 1.442695
          %v1042 = vpow.pop %v1041
          %v1043 = vmul.f32 %v1038, 1.442695
          %v1044 = vpow.pop %v1043
          %v1045 = vmul.f32 %v1039, 1.442695
          %v1046 = vpow.pop %v1045
          %v1047 = vmul.f32 %v1040, 1.442695
          %v1048 = vpow.pop %v1047
          %v1049 = vmul.f32 %v1030, %v909
          %v1050 = vmul.f32 %v1032, %v910
          %v1051 = vmul.f32 %v1034, %v911
          %v1052 = vmul.f32 %v1036, %v912
          %v1053 = vsel %vm932, %v1042, 0.0
          %1054 = vadd.xlane.f32.xlu0 %v1053
          %v1055 = vpop.xlane.xlu0 %1054
          %v1056 = vsel %vm932, %v1044, 0.0
          %1057 = vadd.xlane.f32.xlu0 %v1056
          %v1058 = vpop.xlane.xlu0 %1057
          %v1059 = vsel %vm932, %v1046, 0.0
          %1060 = vadd.xlane.f32.xlu0 %v1059
          %v1061 = vpop.xlane.xlu0 %1060
          %v1062 = vsel %vm932, %v1048, 0.0
          %1063 = vadd.xlane.f32.xlu0 %v1062
          %v1064 = vpop.xlane.xlu0 %1063
          %v1065 = vadd.f32 %v1049, %v1055
          %v1066 = vadd.f32 %v1050, %v1058
          %v1067 = vadd.f32 %v1051, %v1061
          %v1068 = vadd.f32 %v1052, %v1064
          %v1069 = vmul.f32 %v1030, %v913
          %v1070 = vmul.f32 %v1032, %v914
          %v1071 = vmul.f32 %v1034, %v915
          %v1072 = vmul.f32 %v1036, %v916
          %v1073 = vpack.c.bf16 %v1042, %v1042
          %v1074 = vpack.c.bf16 %v1044, %v1044
          %v1075 = vpack.c.bf16 %v1046, %v1046
          %v1076 = vpack.c.bf16 %v1048, %v1048
          %v1078 = vsel %vm932, %v1073, 0
          %vm1080 = vcmask 1043456
          %v1082 = vsel %vm1080, %v928, 0
          %1084 = vmatpush.bf16.msra.mxu0 0
          %1085 = vmatpush.bf16.msra.mxu0 0
          %1086 = vmatpush.bf16.msra.mxu0 0
          %1087 = vmatpush.bf16.msra.mxu0 0
          %1088 = vmatpush.bf16.msra.mxu0 0
          %1089 = vmatpush.bf16.msra.mxu0 0
          %1090 = vmatpush.bf16.msra.mxu0 0
          %1091 = vmatpush.bf16.msra.mxu0 %v1082
          %1092 = vmatmul.bf16.gmra.mxu0 %v1078
          %v1093 = vpop.f32.mrf.mxu0
          %v1094 = vadd.f32 0.0, %v1093
          %v1095 = vpop.f32.mrf.mxu0
          %1096 = vdwg.mxu0
          %v1098 = vsel %vm932, %v1074, 0
          %v1101 = vsel %vm1080, %v929, 0
          %1103 = vmatpush.bf16.msra.mxu0 0
          %1104 = vmatpush.bf16.msra.mxu0 0
          %1105 = vmatpush.bf16.msra.mxu0 0
          %1106 = vmatpush.bf16.msra.mxu0 0
          %1107 = vmatpush.bf16.msra.mxu0 0
          %1108 = vmatpush.bf16.msra.mxu0 0
          %1109 = vmatpush.bf16.msra.mxu0 0
          %1110 = vmatpush.bf16.msra.mxu0 %v1101
          %1111 = vmatmul.bf16.gmra.mxu0 %v1098
          %v1112 = vpop.f32.mrf.mxu0
          %v1113 = vadd.f32 0.0, %v1112
          %v1114 = vpop.f32.mrf.mxu0
          %1115 = vdwg.mxu0
          %v1117 = vsel %vm932, %v1075, 0
          %v1120 = vsel %vm1080, %v930, 0
          %1122 = vmatpush.bf16.msra.mxu0 0
          %1123 = vmatpush.bf16.msra.mxu0 0
          %1124 = vmatpush.bf16.msra.mxu0 0
          %1125 = vmatpush.bf16.msra.mxu0 0
          %1126 = vmatpush.bf16.msra.mxu0 0
          %1127 = vmatpush.bf16.msra.mxu0 0
          %1128 = vmatpush.bf16.msra.mxu0 0
          %1129 = vmatpush.bf16.msra.mxu0 %v1120
          %1130 = vmatmul.bf16.gmra.mxu0 %v1117
          %v1131 = vpop.f32.mrf.mxu0
          %v1132 = vadd.f32 0.0, %v1131
          %v1133 = vpop.f32.mrf.mxu0
          %1134 = vdwg.mxu0
          %v1136 = vsel %vm932, %v1076, 0
          %v1139 = vsel %vm1080, %v931, 0
          %1141 = vmatpush.bf16.msra.mxu0 0
          %1142 = vmatpush.bf16.msra.mxu0 0
          %1143 = vmatpush.bf16.msra.mxu0 0
          %1144 = vmatpush.bf16.msra.mxu0 0
          %1145 = vmatpush.bf16.msra.mxu0 0
          %1146 = vmatpush.bf16.msra.mxu0 0
          %1147 = vmatpush.bf16.msra.mxu0 0
          %1148 = vmatpush.bf16.msra.mxu0 %v1139
          %1149 = vmatmul.bf16.gmra.mxu0 %v1136
          %v1150 = vpop.f32.mrf.mxu0
          %v1151 = vadd.f32 0.0, %v1150
          %v1152 = vpop.f32.mrf.mxu0
          %1153 = vdwg.mxu0
          %v1154 = vadd.f32 %v1069, %v1094
          %v1155 = vadd.f32 %v1070, %v1113
          %v1156 = vadd.f32 %v1071, %v1132
          %v1157 = vadd.f32 %v1072, %v1151
        $region105: #{tpu_custom_call.1} parent=79 // loop_footer
          %s904 = sadd.s32 1, %s900
        $region106: #{tpu_custom_call.1} parent=79 // loop_footer_branch
          %899 = sbr.rel target = $region102
        $region107: #{tpu_custom_call.1} parent=79 // loop_exit
          _
        %v1158 = vrcp.pop %v909
        %v1159 = vrcp.pop %v910
        %v1160 = vrcp.pop %v911
        %v1161 = vrcp.pop %v912
        %v1162 = vmul.f32 %v913, %v1158
        %v1163 = vmul.f32 %v914, %v1159
        %v1164 = vmul.f32 %v915, %v1160
        %v1165 = vmul.f32 %v916, %v1161
        %v1166 = vpack.c.bf16 %v1162, %v1162
        %1167 = vst.msk [vmem:[#allocation5] sm:$0xf] %vm877, %v1166
        %v1168 = vpack.c.bf16 %v1163, %v1163
        %1170 = vrot.lane.b32.xlu0 %v1168, 8
        %v1171 = vpop.permute.xlu0 %1170
        %vm1173 = vcmask 126016
        %1174 = vst.msk [vmem:[#allocation5] sm:$0xf] %vm1173, %v1171
        %v1175 = vpack.c.bf16 %v1164, %v1164
        %1177 = vrot.lane.b32.xlu0 %v1175, 16
        %v1178 = vpop.permute.xlu0 %1177
        %vm1180 = vcmask 191616
        %1181 = vst.msk [vmem:[#allocation5] sm:$0xf] %vm1180, %v1178
        %v1182 = vpack.c.bf16 %v1165, %v1165
        %1184 = vrot.lane.b32.xlu0 %v1182, 24
        %v1185 = vpop.permute.xlu0 %1184
        %vm1187 = vcmask 257216
        %1188 = vst.msk [vmem:[#allocation5] sm:$0xf] %vm1187, %v1185
        %v1189 = vld [vmem:[#allocation5] sm:$0xf]
        %v1190 = vld [vmem:[#allocation11] sm:$0xf]
        %v1191 = vld [vmem:[#allocation11 + $0x4] sm:$0xf]
        %v1192 = vld [vmem:[#allocation11 + $0x8] sm:$0xf]
        %v1193 = vld [vmem:[#allocation11 + $0xc] sm:$0xf]
        %v1194 = vld [vmem:[%s8] sm:$0x1]
        %v1196 = vperm.slane %v1194, 0
        %v1202 = vunpack.c.l.b16 %v1190
        %v1203 = vunpack.c.l.b16 %v1191
        %v1204 = vunpack.c.l.b16 %v1192
        %v1205 = vunpack.c.l.b16 %v1193
        %v1206 = vpack.c.b16 %v1203, %v1202
        %v1207 = vpack.c.b16 %v1205, %v1204
        %v1211 = vsel %vm785, %v1189, 0
        %1213 = vmatpush.bf16.msra.mxu0 0
        %1214 = vmatpush.bf16.msra.mxu0 0
        %1215 = vmatpush.bf16.msra.mxu0 0
        %1216 = vmatpush.bf16.msra.mxu0 0
        %1217 = vmatpush.bf16.msra.mxu0 0
        %1218 = vmatpush.bf16.msra.mxu0 0
        %1219 = vmatpush.bf16.msra.mxu0 %v1207
        %1220 = vmatpush.bf16.msra.mxu0 %v1206
        %1221 = vmatmul.bf16.gmra.mxu0 %v1211
        %v1222 = vpop.f32.mrf.mxu0
        %v1223 = vadd.f32 %v1196, %v1222
        %v1224 = vpop.f32.mrf.mxu0
        %1225 = vdwg.mxu0
        %v1226 = vadd.f32 %v784, %v1223
        %v1227 = vld [vmem:[%s9] sm:$0x1]
        %v1228 = vld [vmem:[%s10] sm:$0x1]
        %v1229 = vsel %vm785, %v1226, 0.0
        %1230 = vadd.xlane.f32.xlu0 %v1229
        %v1231 = vpop.xlane.xlu0 %1230
        %v1232 = vmul.f32 %v1231, %v795
        %v1233 = vsub.f32 %v1226, %v1232
        %v1234 = vmul.f32 %v1233, %v1233
        %v1235 = vsel %vm785, %v1234, 0.0
        %1236 = vadd.xlane.f32.xlu0 %v1235
        %v1237 = vpop.xlane.xlu0 %1236
        %v1238 = vmul.f32 %v1237, 0.032258064
        %v1239 = vrsqrt.pop %v1238
        %v1240 = vmul.f32 %v1239, %v1238
        %v1241 = vmul.f32 %v1240, %v1239
        %v1242 = vmul.f32 0.5, %v1241
        %v1243 = vsub.f32 1.5, %v1242
        %v1244 = vmul.f32 %v1239, %v1243
        %v1245 = vmul.f32 %v1238, %v1244
        %vm1246 = vcmp.eq.f32.partialorder %v1238, inf
        %v1247 = vsel %vm1246, %v1238, %v1245
        %vm1248 = vcmp.eq.f32.partialorder %v1238, 0.0
        %v1249 = vand.u32 %v1238, 2147483648
        %v1250 = vsel %vm1248, %v1249, %v1247
        %v1251 = vadd.f32 %v1250, 1e-06
        %v1252 = vrcp.pop %v1251
        %v1253 = vmul.f32 %v1251, %v1252
        %v1254 = vsub.f32 1.0, %v1253
        %v1255 = vmul.f32 %v1252, %v1254
        %v1256 = vadd.f32 %v1252, %v1255
        %vm1257 = vweird.f32 %v1251
        %vm1258 = vweird.f32 %v1252
        %vm1259 = vmor %vm1257, %vm1258
        %v1260 = vsel %vm1259, %v1252, %v1256
        %v1261 = vand.u32 2147483647, %v1251
        %vm1262 = vcmp.eq.f32.partialorder %v1261, 8.507059e+37
        %v1263 = vand.u32 %v1251, 2147483648
        %v1264 = vor.u32 1.1754944e-38, %v1263
        %v1265 = vsel %vm1262, %v1264, %v1260
        %v1266 = vmul.f32 %v1233, %v1265
        %v1268 = vperm.slane %v1227, 0
        %v1270 = vmul.f32 %v1268, %v1266
        %v1272 = vperm.slane %v1228, 0
        %v1274 = vadd.f32 %v1270, %v1272
        %v1275 = vpack.c.bf16 %v1274, %v1274
        %v1276 = vld [vmem:[#allocation12] sm:$0xf]
        %v1277 = vld [vmem:[#allocation12 + $0x4] sm:$0xf]
        %v1278 = vld [vmem:[#allocation12 + $0x8] sm:$0xf]
        %v1279 = vld [vmem:[#allocation12 + $0xc] sm:$0xf]
        %v1280 = vld [vmem:[%s12] sm:$0x1]
        %v1282 = vperm.slane %v1280, 0
        %v1288 = vunpack.c.l.b16 %v1276
        %v1289 = vunpack.c.l.b16 %v1277
        %v1290 = vunpack.c.l.b16 %v1278
        %v1291 = vunpack.c.l.b16 %v1279
        %v1292 = vpack.c.b16 %v1289, %v1288
        %v1293 = vpack.c.b16 %v1291, %v1290
        %v1297 = vsel %vm785, %v1275, 0
        %1299 = vmatpush.bf16.msra.mxu0 0
        %1300 = vmatpush.bf16.msra.mxu0 0
        %1301 = vmatpush.bf16.msra.mxu0 0
        %1302 = vmatpush.bf16.msra.mxu0 0
        %1303 = vmatpush.bf16.msra.mxu0 0
        %1304 = vmatpush.bf16.msra.mxu0 0
        %1305 = vmatpush.bf16.msra.mxu0 %v1293
        %1306 = vmatpush.bf16.msra.mxu0 %v1292
        %1307 = vmatmul.bf16.gmra.mxu0 %v1297
        %v1308 = vpop.f32.mrf.mxu0
        %v1309 = vadd.f32 %v1282, %v1308
        %v1310 = vpop.f32.mrf.mxu0
        %1311 = vdwg.mxu0
        %v1312 = vmax.f32 %v1309, 0.0
        %v1313 = vpack.c.bf16 %v1312, %v1312
        %v1314 = vld [vmem:[%s13] sm:$0xf]
        %v1315 = vld [vmem:[%s13 + $0x4] sm:$0xf]
        %v1316 = vld [vmem:[%s13 + $0x8] sm:$0xf]
        %v1317 = vld [vmem:[%s13 + $0xc] sm:$0xf]
        %v1318 = vld [vmem:[%s13 + $0x10] sm:$0xf]
        %v1319 = vld [vmem:[%s13 + $0x14] sm:$0xf]
        %v1320 = vld [vmem:[%s13 + $0x18] sm:$0xf]
        %v1321 = vld [vmem:[%s13 + $0x1c] sm:$0xf]
        %v1322 = vld [vmem:[%s14] sm:$0x1]
        %v1324 = vperm.slane %v1322, 0
        %v1334 = vunpack.c.l.b16 %v1314
        %v1335 = vunpack.c.l.b16 %v1315
        %v1336 = vunpack.c.l.b16 %v1316
        %v1337 = vunpack.c.l.b16 %v1317
        %v1338 = vunpack.c.l.b16 %v1318
        %v1339 = vunpack.c.l.b16 %v1319
        %v1340 = vunpack.c.l.b16 %v1320
        %v1341 = vunpack.c.l.b16 %v1321
        %v1342 = vpack.c.b16 %v1335, %v1334
        %v1343 = vpack.c.b16 %v1337, %v1336
        %v1344 = vpack.c.b16 %v1339, %v1338
        %v1345 = vpack.c.b16 %v1341, %v1340
        %vm1350 = vcmask 523264
        %v1352 = vsel %vm1350, %v1313, 0
        %1354 = vmatpush.bf16.msra.mxu0 0
        %1355 = vmatpush.bf16.msra.mxu0 0
        %1356 = vmatpush.bf16.msra.mxu0 0
        %1357 = vmatpush.bf16.msra.mxu0 0
        %1358 = vmatpush.bf16.msra.mxu0 %v1345
        %1359 = vmatpush.bf16.msra.mxu0 %v1344
        %1360 = vmatpush.bf16.msra.mxu0 %v1343
        %1361 = vmatpush.bf16.msra.mxu0 %v1342
        %1362 = vmatmul.bf16.gmra.mxu0 %v1352
        %v1363 = vpop.f32.mrf.mxu0
        %v1364 = vadd.f32 %v1324, %v1363
        %v1365 = vpop.f32.mrf.mxu0
        %1366 = vdwg.mxu0
        %v1367 = vadd.f32 %v1226, %v1364
        %1368 = vst.msk [vmem:[%s566] sm:$0xff] %vm785, %v1367
        %s1369 = sand.u32 %s374, 1
        %s1370 = scalar_lea.sflag [#allocation8], %s1369
        %s1371 = sand.u32 %s374, 1
        %s1372 = smul.addr %s1371, 8
        %s1373 = scalar_lea.vmem [#allocation14], %s1372
        // Predicated region
        $region108: #{tpu_custom_call.1} parent=79 // pred_check
          %p1374 = pneg %p384
        $region109: #{tpu_custom_call.1} parent=79 // pred_check_branch
          %1376 = sbr.rel (%p1374) target = $region111
        $region110: #{tpu_custom_call.1} parent=79 // pred_region
          %1378 = vsyncadd %s1370, 0
          %s1379 = smul.addr %s36, 2
          %s1380 = sadd.s32 %s37, %s1379
          %s1381 = smul.addr %s1380, 8
          %s1382 = scalar_lea.hbm %s15, %s1381
          %s1384 = sshll.u32 %s1373, 4
          %s1385 = int_to_ptr.vmem [resolvable:$true] %s1384
          %s1386 = sshll.u32 %s1382, 4
          %s1387 = int_to_ptr.hbm [resolvable:$true] %s1386
          %1389 = dma.vmem_to_hbm [thread:$0]  %s1385, 128, %s1387, %s1370
        $region111: #{tpu_custom_call.1} parent=79 // pred_fallthru
          _
      $region80: #{tpu_custom_call.1} parent=5 // pred_fallthru
        _
      %p1390 = scmp.le.s32.totalorder 2, %s27
      // Predicated region
      $region112: #{tpu_custom_call.1} parent=5 // pred_check
        %p1391 = pneg %p1390
      $region113: #{tpu_custom_call.1} parent=5 // pred_check_branch
        %1393 = sbr.rel (%p1391) target = $region115
      $region114: #{tpu_custom_call.1} parent=5 // pred_region
        %s1394 = ssub.s32 %s27, 2
        // Predicated region
        $region116: #{tpu_custom_call.1} parent=114 // pred_check
          %p1395 = pneg %p390
        $region117: #{tpu_custom_call.1} parent=114 // pred_check_branch
          %1397 = sbr.rel (%p1395) target = $region119
        $region118: #{tpu_custom_call.1} parent=114 // pred_region
          %s1398 = sand.u32 %s375, 1
          %s1399 = scalar_lea.sflag [#allocation8], %s1398
          %s1400 = sand.u32 %s375, 1
          %s1401 = smul.addr %s1400, 8
          %s1402 = scalar_lea.vmem [#allocation14], %s1401
          %1404 = dma.done %s1399, 128
        $region119: #{tpu_custom_call.1} parent=114 // pred_fallthru
          _
      $region115: #{tpu_custom_call.1} parent=5 // pred_fallthru
        _
    $region6: #{tpu_custom_call.1} parent=1 // loop_footer
      %s31 = sadd.s32 1, %s27
    $region7: #{tpu_custom_call.1} parent=1 // loop_footer_branch
      %26 = sbr.rel target = $region3
    $region8: #{tpu_custom_call.1} parent=1 // loop_exit
      _
    %1405 = vsyncpa [#allocation7], 1
    %s1406 = scalar_lea.sflag [#allocation7], 1
    %1407 = vsyncpa %s1406, 1
    %1408 = vsyncpa [#allocation10], 1
    %1409 = vsyncpa [#allocation13], 1
    %1410 = vsyncpa [#allocation8], 1
    %s1411 = scalar_lea.sflag [#allocation8], 1
    %1412 = vsyncpa %s1411, 1

</llo_original>
